<compile_context>
chip_gen: v7x
topology: tpu7x:2x2x1
jax: 0.10.0
libtpu: 0.0.40
codegen_flags: <defaults>
</compile_context>

<pallas_src>
import math
import numpy as np
import jax
import jax.numpy as jnp
from jax.experimental import pallas as pl
from jax.experimental.pallas import tpu as pltpu

# ---------------- model hyper-params (small, consistent with the module) ----
B = 2          # batch used in the demo
S = 8          # number of "other" entities (attention set size)
Q_SIZE = 32
K_SIZE = 32
HIDDEN = 32
OUT_SIZE = 32
N_HEAD = 4
LN_EPS = 1e-5
FUSED = N_HEAD * HIDDEN        # 128 -> exactly one full lane dimension
OUT_PAD = 128                  # lane-dense padded output width
ROWS_MAX = 256                 # max batch rows per grid step (fits scoped VMEM on all gens)
APPROX_RECIP = True            # EUP approx reciprocal in softmax; set False for tighter numerics


# ---------------- deterministic parameter init (orthogonal weights, 0 bias) --
def _orthogonal(rng, rows, cols):
    """Mimics nn.init.orthogonal_ for a (rows, cols) matrix (deterministic)."""
    n, m = (rows, cols) if rows >= cols else (cols, rows)
    a = rng.standard_normal((n, m))
    q, r = np.linalg.qr(a)
    q = q * np.sign(np.diag(r))
    if rows < cols:
        q = q.T
    return q[:rows, :cols].astype(np.float32)


def make_params(seed=0):
    rng = np.random.default_rng(seed)
    # torch Linear weight is (out, in); store the transpose (in, out) per head.
    wq_h = np.stack([_orthogonal(rng, HIDDEN, Q_SIZE).T for _ in range(N_HEAD)])   # (H, Q, Hd)
    wk_h = np.stack([_orthogonal(rng, HIDDEN, K_SIZE).T for _ in range(N_HEAD)])   # (H, K, Hd)
    wv_h = np.stack([_orthogonal(rng, HIDDEN, K_SIZE).T for _ in range(N_HEAD)])   # (H, K, Hd)
    bq_h = np.zeros((N_HEAD, HIDDEN), np.float32)                                  # (H, Hd)
    wo = _orthogonal(rng, OUT_SIZE, FUSED).T                                       # (128, O)
    gamma = np.ones((1, FUSED), np.float32)                                        # LN weight
    beta = np.zeros((1, FUSED), np.float32)                                        # LN bias

    # Head-fused, lane-dense packing; fold the 1/sqrt(Hd) score scale into the
    # query path so the kernel never multiplies by it.
    scale = np.float32(1.0 / math.sqrt(HIDDEN))
    wq = np.concatenate(list(wq_h), axis=1) * scale                                # (Q, 128)
    bq = (bq_h.reshape(1, FUSED) * scale).astype(np.float32)                       # (1, 128)
    wk = np.concatenate(list(wk_h), axis=1)                                        # (K, 128)
    wv = np.concatenate(list(wv_h), axis=1)                                        # (K, 128)
    wkv = np.concatenate([wk, wv], axis=1).astype(np.float32)                      # (K, 256)

    # Zero-pad wo to 128 output lanes -> unmasked, lane-dense output stores.
    wo_pad = np.zeros((FUSED, OUT_PAD), np.float32)
    wo_pad[:, :OUT_SIZE] = wo

    # Pack the three (1,128) constants into one input stream.
    consts = np.concatenate([bq, gamma, beta], axis=0).astype(np.float32)          # (3, 128)

    # Block-diagonal 0/1 matrix: segmented per-head sum over 32 lanes with the
    # result replicated back across each head's 32 lanes, in one MXU matmul.
    ee = np.kron(np.eye(N_HEAD, dtype=np.float32),
                 np.ones((HIDDEN, HIDDEN), np.float32))                            # (128, 128)

    return dict(
        # packed params consumed by the Pallas kernel
        wq=jnp.array(wq), wkv=jnp.array(wkv), wo_pad=jnp.array(wo_pad),
        consts=jnp.array(consts), ee=jnp.array(ee),
        # raw params for the pure-JAX reference
        wq_heads=jnp.array(wq_h), bq_heads=jnp.array(bq_h),
        wk_heads=jnp.array(wk_h), wv_heads=jnp.array(wv_h),
        wo=jnp.array(wo), gamma=jnp.array(gamma), beta=jnp.array(beta))


# ---------------- Pallas kernel ---------------------------------------------
def mhat2_kernel(me_ref, other_ref, wq_ref, wkv_ref, wo_ref, consts_ref, ee_ref,
                 out_ref):
    rows = me_ref.shape[0]

    me = me_ref[...]                               # (R, 32)
    other = other_ref[...]                         # (R*S, 32)  -- flattened in the wrapper
    consts = consts_ref[...]                       # (3, 128): bq*scale | gamma | beta
    bq = consts[0:1]
    gamma = consts[1:2]
    beta = consts[2:3]

    # Head-fused, lane-dense projections (1/sqrt(hidden) folded into wq/bq).
    # k|v fused into one (32, 256) matmul on the dominant `other` stream.
    q = jnp.dot(me, wq_ref[...], preferred_element_type=jnp.float32) + bq          # (R, 128)
    kv = jnp.dot(other, wkv_ref[...], preferred_element_type=jnp.float32)          # (R*S, 256)
    k = kv[:, :FUSED]                              # static lane-aligned slices (free)
    v = kv[:, FUSED:]

    # q broadcast across the S entities (sublane broadcast); stay lane-packed.
    qk = (q[:, None, :] * k.reshape(rows, S, FUSED)).reshape(rows * S, FUSED)      # (R*S, 128)

    # Per-head segmented sum over each head's 32 lanes, replicated back across
    # those lanes, as one matmul against the constant 0/1 block-diagonal matrix
    # (otherwise-idle MXU; HIGHEST precision keeps this reduction equivalent to
    # the VPU sum it replaces, at negligible cost for a 128x128 exact-0/1 rhs).
    s_rep = jnp.dot(qk, ee_ref[...], preferred_element_type=jnp.float32,
                    precision=jax.lax.Precision.HIGHEST)                           # (R*S, 128)

    # Softmax over the entity axis (numerically stable; reciprocal on the EUP).
    s3 = s_rep.reshape(rows, S, FUSED)
    s3 = s3 - jnp.max(s3, axis=1, keepdims=True)
    e = jnp.exp(s3)
    denom = jnp.sum(e, axis=1, keepdims=True)
    if APPROX_RECIP:
        p = e * pl.reciprocal(denom, approx=True)                                  # (R, S, 128)
    else:
        p = e / denom

    # Context: per-head weighted sum of v; heads remain packed along lanes.
    c = jnp.sum(p * v.reshape(rows, S, FUSED), axis=1)                             # (R, 128)

    # LayerNorm over the fused feature axis.
    mu = jnp.mean(c, axis=-1, keepdims=True)
    var = jnp.mean((c - mu) ** 2, axis=-1, keepdims=True)
    cn = (c - mu) * jax.lax.rsqrt(var + LN_EPS) * gamma + beta

    # ReLU + output projection, zero-padded to 128 lanes -> unmasked store.
    out_ref[...] = jnp.dot(jnp.maximum(cn, 0.0), wo_ref[...],
                           preferred_element_type=jnp.float32)


# ---------------- wrapper -----------------------------------------------------
def _round_up(x, m):
    return (x + m - 1) // m * m


def _choose_tiling(b):
    """Pick rows-per-step and padded batch: big tiles, sublane-aligned, and
    >= 2 grid steps when the batch allows so v7x's two TCs both get work."""
    b8 = _round_up(b, 8)
    n_steps = max(1, -(-b8 // ROWS_MAX))
    if n_steps < 2 and b8 >= 16:
        n_steps = 2
    rows = _round_up(-(-b8 // n_steps), 8)
    return rows, rows * n_steps


def mhat2_forward(me, other, params):
    b = me.shape[0]
    rows, b_pad = _choose_tiling(b)
    pad = b_pad - b
    # Pad batch with zero rows (padded rows produce finite garbage and are
    # sliced off below); flatten the set dim outside the kernel (free plumbing).
    me_p = jnp.pad(me, ((0, pad), (0, 0)))
    other_p = jnp.pad(other, ((0, pad), (0, 0), (0, 0)))
    other2d = other_p.reshape(b_pad * S, K_SIZE)

    n_kv = b_pad * S
    cost = pl.CostEstimate(
        flops=(2 * b_pad * Q_SIZE * FUSED            # q projection
               + 2 * n_kv * K_SIZE * (2 * FUSED)     # fused k|v projection
               + 2 * n_kv * FUSED * FUSED            # segmented-sum/replicate matmul
               + 2 * b_pad * FUSED * OUT_PAD         # output projection
               + 8 * n_kv * FUSED),                  # qk product, softmax, context
        transcendentals=n_kv * FUSED,
        bytes_accessed=4 * (me_p.size + other2d.size + b_pad * OUT_PAD
                            + Q_SIZE * FUSED + K_SIZE * 2 * FUSED
                            + FUSED * OUT_PAD + 3 * FUSED + FUSED * FUSED))

    out = pl.pallas_call(
        mhat2_kernel,
        out_shape=jax.ShapeDtypeStruct((b_pad, OUT_PAD), jnp.float32),
        grid_spec=pltpu.PrefetchScalarGridSpec(
            num_scalar_prefetch=0,
            grid=(b_pad // rows,),
            in_specs=[
                pl.BlockSpec((rows, Q_SIZE), lambda i: (i, 0)),          # me
                pl.BlockSpec((rows * S, K_SIZE), lambda i: (i, 0)),      # other (flattened)
                pl.BlockSpec((Q_SIZE, FUSED), lambda i: (0, 0)),         # wq (scale folded)
                pl.BlockSpec((K_SIZE, 2 * FUSED), lambda i: (0, 0)),     # wk|wv fused
                pl.BlockSpec((FUSED, OUT_PAD), lambda i: (0, 0)),        # wo zero-padded
                pl.BlockSpec((3, FUSED), lambda i: (0, 0)),              # bq|gamma|beta
                pl.BlockSpec((FUSED, FUSED), lambda i: (0, 0)),          # head block-diag
            ],
            out_specs=pl.BlockSpec((rows, OUT_PAD), lambda i: (i, 0)),
        ),
        compiler_params=pltpu.CompilerParams(
            dimension_semantics=("parallel",),
            vmem_limit_bytes=32 * 1024 * 1024),      # covers v5e's 16 MiB default at big tiles
        cost_estimate=cost,
    )(me_p, other2d, params["wq"], params["wkv"], params["wo_pad"],
      params["consts"], params["ee"])
    return out[:b, :OUT_SIZE]


# ---------------- pure-JAX reference for correctness check ------------------
def mhat2_reference(me, other, params):
    outs = []
    for h in range(N_HEAD):
        q = me @ params["wq_heads"][h] + params["bq_heads"][h]
        k = jnp.einsum("bsk,kh->bsh", other, params["wk_heads"][h], precision="highest")
        v = jnp.einsum("bsk,kh->bsh", other, params["wv_heads"][h], precision="highest")
        a = jnp.einsum("bh,bsh->bs", q, k, precision="highest") / math.sqrt(HIDDEN)
        a = jax.nn.softmax(a, axis=-1)
        outs.append(jnp.einsum("bs,bsh->bh", a, v, precision="highest"))
    c = jnp.concatenate(outs, axis=-1)
    mu = c.mean(-1, keepdims=True)
    var = ((c - mu) ** 2).mean(-1, keepdims=True)
    cn = (c - mu) / jnp.sqrt(var + LN_EPS) * params["gamma"][0] + params["beta"][0]
    return jnp.maximum(cn, 0.0) @ params["wo"]


if __name__ == "__main__":
    key = jax.random.PRNGKey(0)
    params = make_params(seed=0)

    # Exercise both the single-step grid (batch=2 -> 8 padded rows) and the
    # multi-step "parallel" grid path (batch=20 -> 2 steps of 16 rows).
    for batch in (B, 20):
        k1, k2 = jax.random.split(jax.random.fold_in(key, batch))
        me = jax.random.normal(k1, (batch, Q_SIZE), dtype=jnp.float32)
        other = jax.random.normal(k2, (batch, S, K_SIZE), dtype=jnp.float32)

        out = jax.block_until_ready(mhat2_forward(me, other, params))
        ref = jax.block_until_ready(mhat2_reference(me, other, params))

        np.testing.assert_allclose(np.asarray(out), np.asarray(ref),
                                   rtol=5e-3, atol=5e-3)
        assert out.shape == (batch, OUT_SIZE)

    print("KERNEL_OK")
</pallas_src>

<mosaic_0001>
module attributes {stable_mosaic.version = 11 : i64} {
  func.func @mhat2_kernel(%arg0: i32, %arg1: memref<8x32xf32, #tpu.memory_space<vmem>>, %arg2: memref<64x32xf32, #tpu.memory_space<vmem>>, %arg3: memref<32x128xf32, #tpu.memory_space<vmem>>, %arg4: memref<32x256xf32, #tpu.memory_space<vmem>>, %arg5: memref<128x128xf32, #tpu.memory_space<vmem>>, %arg6: memref<3x128xf32, #tpu.memory_space<vmem>>, %arg7: memref<128x128xf32, #tpu.memory_space<vmem>>, %arg8: memref<8x128xf32, #tpu.memory_space<vmem>>) attributes {dimension_semantics = [#tpu.dimension_semantics<parallel>], iteration_bounds = array<i64: 1>, scalar_prefetch = 0 : i64, scratch_operands = 0 : i64, tpu.core_type = #tpu.core_type<tc>, window_params = [{transform_indices = @transform_0, window_bounds = array<i64: 8, 32>}, {transform_indices = @transform_1, window_bounds = array<i64: 64, 32>}, {pipeline_mode = #tpu.pipeline_mode<synchronous>, transform_indices = @transform_2, window_bounds = array<i64: 32, 128>}, {pipeline_mode = #tpu.pipeline_mode<synchronous>, transform_indices = @transform_3, window_bounds = array<i64: 32, 256>}, {pipeline_mode = #tpu.pipeline_mode<synchronous>, transform_indices = @transform_4, window_bounds = array<i64: 128, 128>}, {pipeline_mode = #tpu.pipeline_mode<synchronous>, transform_indices = @transform_5, window_bounds = array<i64: 3, 128>}, {pipeline_mode = #tpu.pipeline_mode<synchronous>, transform_indices = @transform_6, window_bounds = array<i64: 128, 128>}, {transform_indices = @transform_7, window_bounds = array<i64: 8, 128>}]} {
    %c0 = arith.constant 0 : index
    %c0_0 = arith.constant 0 : index
    %0 = vector.load %arg1[%c0, %c0_0] : memref<8x32xf32, #tpu.memory_space<vmem>>, vector<8x32xf32>
    %c0_1 = arith.constant 0 : index
    %c0_2 = arith.constant 0 : index
    %1 = vector.load %arg2[%c0_1, %c0_2] : memref<64x32xf32, #tpu.memory_space<vmem>>, vector<64x32xf32>
    %c0_3 = arith.constant 0 : index
    %c0_4 = arith.constant 0 : index
    %2 = vector.load %arg6[%c0_3, %c0_4] : memref<3x128xf32, #tpu.memory_space<vmem>>, vector<3x128xf32>
    %3 = vector.extract_strided_slice %2 {offsets = [0, 0], sizes = [1, 128], strides = [1, 1]} : vector<3x128xf32> to vector<1x128xf32>
    %4 = vector.extract_strided_slice %2 {offsets = [1, 0], sizes = [1, 128], strides = [1, 1]} : vector<3x128xf32> to vector<1x128xf32>
    %5 = vector.extract_strided_slice %2 {offsets = [2, 0], sizes = [1, 128], strides = [1, 1]} : vector<3x128xf32> to vector<1x128xf32>
    %c0_5 = arith.constant 0 : index
    %c0_6 = arith.constant 0 : index
    %6 = vector.load %arg3[%c0_5, %c0_6] : memref<32x128xf32, #tpu.memory_space<vmem>>, vector<32x128xf32>
    %cst = arith.constant dense<0.000000e+00> : vector<8x128xf32>
    %7 = tpu.matmul %0, %6, %cst {dimension_numbers = #tpu.dot_dimension_numbers<[1], [0], [0], [1], [0, 0, 1, 1], [], []>} : vector<8x32xf32>, vector<32x128xf32>, vector<8x128xf32> -> vector<8x128xf32>
    %8 = vector.broadcast %3 : vector<1x128xf32> to vector<8x128xf32>
    %9 = arith.addf %7, %8 : vector<8x128xf32>
    %c0_7 = arith.constant 0 : index
    %c0_8 = arith.constant 0 : index
    %10 = vector.load %arg4[%c0_7, %c0_8] : memref<32x256xf32, #tpu.memory_space<vmem>>, vector<32x256xf32>
    %cst_9 = arith.constant dense<0.000000e+00> : vector<64x256xf32>
    %11 = tpu.matmul %1, %10, %cst_9 {dimension_numbers = #tpu.dot_dimension_numbers<[1], [0], [0], [1], [0, 0, 1, 1], [], []>} : vector<64x32xf32>, vector<32x256xf32>, vector<64x256xf32> -> vector<64x256xf32>
    %12 = vector.extract_strided_slice %11 {offsets = [0, 0], sizes = [64, 128], strides = [1, 1]} : vector<64x256xf32> to vector<64x128xf32>
    %13 = vector.extract_strided_slice %11 {offsets = [0, 128], sizes = [64, 128], strides = [1, 1]} : vector<64x256xf32> to vector<64x128xf32>
    %14 = vector.shape_cast %9 : vector<8x128xf32> to vector<8x1x128xf32>
    %15 = vector.shape_cast %12 : vector<64x128xf32> to vector<8x8x128xf32>
    %16 = vector.broadcast %14 : vector<8x1x128xf32> to vector<8x8x128xf32>
    %17 = arith.mulf %16, %15 : vector<8x8x128xf32>
    %18 = vector.shape_cast %17 : vector<8x8x128xf32> to vector<64x128xf32>
    %c0_10 = arith.constant 0 : index
    %c0_11 = arith.constant 0 : index
    %19 = vector.load %arg7[%c0_10, %c0_11] : memref<128x128xf32, #tpu.memory_space<vmem>>, vector<128x128xf32>
    %cst_12 = arith.constant dense<0.000000e+00> : vector<64x128xf32>
    %20 = tpu.matmul %18, %19, %cst_12 {dimension_numbers = #tpu.dot_dimension_numbers<[1], [0], [0], [1], [0, 0, 1, 1], [], []>, precision = #tpu.contract_precision<fp32>} : vector<64x128xf32>, vector<128x128xf32>, vector<64x128xf32> -> vector<64x128xf32>
    %21 = vector.shape_cast %20 : vector<64x128xf32> to vector<8x8x128xf32>
    %cst_13 = arith.constant dense<0xFF800000> : vector<8x128xf32>
    %22 = vector.multi_reduction <maximumf>, %21, %cst_13 [1] : vector<8x8x128xf32> to vector<8x128xf32>
    %23 = vector.shape_cast %22 : vector<8x128xf32> to vector<8x1x128xf32>
    %24 = vector.broadcast %23 : vector<8x1x128xf32> to vector<8x8x128xf32>
    %25 = arith.subf %21, %24 : vector<8x8x128xf32>
    %26 = math.exp %25 : vector<8x8x128xf32>
    %cst_14 = arith.constant dense<0.000000e+00> : vector<8x128xf32>
    %27 = vector.multi_reduction <add>, %26, %cst_14 [1] : vector<8x8x128xf32> to vector<8x128xf32>
    %28 = vector.shape_cast %27 : vector<8x128xf32> to vector<8x1x128xf32>
    %29 = tpu.reciprocal %28 {approx = true} : vector<8x1x128xf32> -> vector<8x1x128xf32>
    %30 = vector.broadcast %29 : vector<8x1x128xf32> to vector<8x8x128xf32>
    %31 = arith.mulf %26, %30 : vector<8x8x128xf32>
    %32 = vector.shape_cast %13 : vector<64x128xf32> to vector<8x8x128xf32>
    %33 = arith.mulf %31, %32 : vector<8x8x128xf32>
    %cst_15 = arith.constant dense<0.000000e+00> : vector<8x128xf32>
    %34 = vector.multi_reduction <add>, %33, %cst_15 [1] : vector<8x8x128xf32> to vector<8x128xf32>
    %cst_16 = arith.constant dense<0.000000e+00> : vector<8xf32>
    %35 = vector.multi_reduction <add>, %34, %cst_16 [1] : vector<8x128xf32> to vector<8xf32>
    %36 = vector.shape_cast %35 : vector<8xf32> to vector<8x1xf32>
    %cst_17 = arith.constant 1.280000e+02 : f32
    %37 = vector.broadcast %cst_17 : f32 to vector<8x1xf32>
    %38 = arith.divf %36, %37 : vector<8x1xf32>
    %39 = vector.broadcast %38 : vector<8x1xf32> to vector<8x128xf32>
    %40 = arith.subf %34, %39 : vector<8x128xf32>
    %41 = arith.mulf %40, %40 : vector<8x128xf32>
    %cst_18 = arith.constant dense<0.000000e+00> : vector<8xf32>
    %42 = vector.multi_reduction <add>, %41, %cst_18 [1] : vector<8x128xf32> to vector<8xf32>
    %43 = vector.shape_cast %42 : vector<8xf32> to vector<8x1xf32>
    %cst_19 = arith.constant 1.280000e+02 : f32
    %44 = vector.broadcast %cst_19 : f32 to vector<8x1xf32>
    %45 = arith.divf %43, %44 : vector<8x1xf32>
    %46 = vector.broadcast %38 : vector<8x1xf32> to vector<8x128xf32>
    %47 = arith.subf %34, %46 : vector<8x128xf32>
    %cst_20 = arith.constant 9.99999974E-6 : f32
    %48 = vector.broadcast %cst_20 : f32 to vector<8x1xf32>
    %49 = arith.addf %45, %48 : vector<8x1xf32>
    %50 = math.rsqrt %49 : vector<8x1xf32>
    %51 = vector.broadcast %50 : vector<8x1xf32> to vector<8x128xf32>
    %52 = arith.mulf %47, %51 : vector<8x128xf32>
    %53 = vector.broadcast %4 : vector<1x128xf32> to vector<8x128xf32>
    %54 = arith.mulf %52, %53 : vector<8x128xf32>
    %55 = vector.broadcast %5 : vector<1x128xf32> to vector<8x128xf32>
    %56 = arith.addf %54, %55 : vector<8x128xf32>
    %cst_21 = arith.constant 0.000000e+00 : f32
    %57 = vector.broadcast %cst_21 : f32 to vector<8x128xf32>
    %58 = arith.maximumf %56, %57 : vector<8x128xf32>
    %c0_22 = arith.constant 0 : index
    %c0_23 = arith.constant 0 : index
    %59 = vector.load %arg5[%c0_22, %c0_23] : memref<128x128xf32, #tpu.memory_space<vmem>>, vector<128x128xf32>
    %cst_24 = arith.constant dense<0.000000e+00> : vector<8x128xf32>
    %60 = tpu.matmul %58, %59, %cst_24 {dimension_numbers = #tpu.dot_dimension_numbers<[1], [0], [0], [1], [0, 0, 1, 1], [], []>} : vector<8x128xf32>, vector<128x128xf32>, vector<8x128xf32> -> vector<8x128xf32>
    %c0_25 = arith.constant 0 : index
    %c0_26 = arith.constant 0 : index
    %61 = vector.load %arg8[%c0_25, %c0_26] : memref<8x128xf32, #tpu.memory_space<vmem>>, vector<8x128xf32>
    tpu.vector_store %arg8[%c0_25, %c0_26], %60 {strides = array<i32>} : memref<8x128xf32, #tpu.memory_space<vmem>>, vector<8x128xf32>,
    return
  }
  func.func @transform_0(%arg0: i32) -> (i32, i32) {
    %c0_i32 = arith.constant 0 : i32
    %c0_i32_0 = arith.constant 0 : i32
    return %arg0, %c0_i32 : i32, i32
  }
  func.func @transform_1(%arg0: i32) -> (i32, i32) {
    %c0_i32 = arith.constant 0 : i32
    %c0_i32_0 = arith.constant 0 : i32
    return %arg0, %c0_i32 : i32, i32
  }
  func.func @transform_2(%arg0: i32) -> (i32, i32) {
    %c0_i32 = arith.constant 0 : i32
    %c0_i32_0 = arith.constant 0 : i32
    %c0_i32_1 = arith.constant 0 : i32
    return %c0_i32, %c0_i32_0 : i32, i32
  }
  func.func @transform_3(%arg0: i32) -> (i32, i32) {
    %c0_i32 = arith.constant 0 : i32
    %c0_i32_0 = arith.constant 0 : i32
    %c0_i32_1 = arith.constant 0 : i32
    return %c0_i32, %c0_i32_0 : i32, i32
  }
  func.func @transform_4(%arg0: i32) -> (i32, i32) {
    %c0_i32 = arith.constant 0 : i32
    %c0_i32_0 = arith.constant 0 : i32
    %c0_i32_1 = arith.constant 0 : i32
    return %c0_i32, %c0_i32_0 : i32, i32
  }
  func.func @transform_5(%arg0: i32) -> (i32, i32) {
    %c0_i32 = arith.constant 0 : i32
    %c0_i32_0 = arith.constant 0 : i32
    %c0_i32_1 = arith.constant 0 : i32
    return %c0_i32, %c0_i32_0 : i32, i32
  }
  func.func @transform_6(%arg0: i32) -> (i32, i32) {
    %c0_i32 = arith.constant 0 : i32
    %c0_i32_0 = arith.constant 0 : i32
    %c0_i32_1 = arith.constant 0 : i32
    return %c0_i32, %c0_i32_0 : i32, i32
  }
  func.func @transform_7(%arg0: i32) -> (i32, i32) {
    %c0_i32 = arith.constant 0 : i32
    %c0_i32_0 = arith.constant 0 : i32
    return %arg0, %c0_i32 : i32, i32
  }
}

</mosaic_0001>

<llo_original>
// kernel: tpu_custom_call.1
$region0: #{tpu_custom_call.1}
  #allocation0 [shape = 'u32[]', space=smem, size = 0x4, offset = 0x4, fixed_abs, tag = 'smem constant byte address 0x4 - core index']
  #allocation1 [shape = 'u32[144,128]{1,0:T(1,128)}', space=vmem, size = 0x12000, scoped, tag = 'internal scratch']
  %s0 = inlined_call_operand.vmem [shape: f32[8,32], index: 0, kind: input, shape index: {}]
  %s1 = inlined_call_operand.vmem [shape: f32[64,32], index: 1, kind: input, shape index: {}]
  %s2 = inlined_call_operand.vmem [shape: f32[32,128], index: 2, kind: input, shape index: {}]
  %s3 = inlined_call_operand.vmem [shape: f32[32,256], index: 3, kind: input, shape index: {}]
  %s4 = inlined_call_operand.hbm [shape: f32[128,128], index: 4, kind: input, shape index: {}]
  %s5 = inlined_call_operand.vmem [shape: f32[3,128], index: 5, kind: input, shape index: {}]
  %s6 = inlined_call_operand.hbm [shape: f32[128,128], index: 6, kind: input, shape index: {}]
  %s7 = inlined_call_operand.hbm [shape: f32[8,128], index: 7, kind: output, shape index: {}]
  %s8 = sld [smem:[#allocation0]]
  $region46: #{tpu_custom_call.1} parent=0
    _
  %s10 = ssub.s32 1, %s8
  %s11 = scalar_select 0, %s10, %s8
  $region1: #{tpu_custom_call.1} parent=0
    #allocation2 [shape = 'u8[65536]{0}', space=vmem, size = 0x10000, scoped, tag = 'input window, operand 4, single buffered']
    #allocation3 [shape = 's32[1]{0}', space=sflag, size = 0x4, scoped, tag = 'scoped memory for tpu_custom_call.1']
    #allocation4 [shape = 's32[1]{0}', space=sflag, size = 0x4, scoped, tag = 'scoped memory for tpu_custom_call.1']
    #allocation5 [shape = 'u8[65536]{0}', space=vmem, size = 0x10000, scoped, tag = 'input window, operand 6, single buffered']
    #allocation6 [shape = 's32[1]{0}', space=sflag, size = 0x4, scoped, tag = 'scoped memory for tpu_custom_call.1']
    #allocation7 [shape = 'u8[4096]{0}', space=vmem, size = 0x1000, scoped, tag = 'output window, operand 0, single buffered']
    %12 = vsyncpa [#allocation3], 0
    %13 = vsyncpa [#allocation6], 0
    %14 = vsyncpa [#allocation4], 0
    // Predicated region
    $region2: #{tpu_custom_call.1} parent=1 // pred_check
      _
    $region3: #{tpu_custom_call.1} parent=1 // pred_check_branch
      %16 = sbr.rel (0) target = $region5
    $region4: #{tpu_custom_call.1} parent=1 // pred_region
      _
    $region5: #{tpu_custom_call.1} parent=1 // pred_fallthru
      _
    // Predicated region
    $region6: #{tpu_custom_call.1} parent=1 // pred_check
      _
    $region7: #{tpu_custom_call.1} parent=1 // pred_check_branch
      %18 = sbr.rel (0) target = $region9
    $region8: #{tpu_custom_call.1} parent=1 // pred_region
      _
    $region9: #{tpu_custom_call.1} parent=1 // pred_fallthru
      _
    // Predicated region
    $region10: #{tpu_custom_call.1} parent=1 // pred_check
      _
    $region11: #{tpu_custom_call.1} parent=1 // pred_check_branch
      %20 = sbr.rel (0) target = $region13
    $region12: #{tpu_custom_call.1} parent=1 // pred_region
      _
    $region13: #{tpu_custom_call.1} parent=1 // pred_fallthru
      _
    // Predicated region
    $region14: #{tpu_custom_call.1} parent=1 // pred_check
      _
    $region15: #{tpu_custom_call.1} parent=1 // pred_check_branch
      %22 = sbr.rel (0) target = $region17
    $region16: #{tpu_custom_call.1} parent=1 // pred_region
      _
    $region17: #{tpu_custom_call.1} parent=1 // pred_fallthru
      _
    // Predicated region
    $region18: #{tpu_custom_call.1} parent=1 // pred_check
      _
    $region19: #{tpu_custom_call.1} parent=1 // pred_check_branch
      %24 = sbr.rel (0) target = $region21
    $region20: #{tpu_custom_call.1} parent=1 // pred_region
      %s26 = ssub.s32 2048, 2048
      %27 = vsyncadd [#allocation3], %s26
      %s28 = sshll.u32 [#allocation2], 4
      %s29 = int_to_ptr.vmem [resolvable:$true] %s28
      %34 = dma.hbm_to_vmem [thread:$0]  %s4, 2048, %s29, [#allocation3], 128, 128, 8
    $region21: #{tpu_custom_call.1} parent=1 // pred_fallthru
      _
    // Predicated region
    $region22: #{tpu_custom_call.1} parent=1 // pred_check
      _
    $region23: #{tpu_custom_call.1} parent=1 // pred_check_branch
      %36 = sbr.rel (0) target = $region25
    $region24: #{tpu_custom_call.1} parent=1 // pred_region
      _
    $region25: #{tpu_custom_call.1} parent=1 // pred_fallthru
      _
    // Predicated region
    $region26: #{tpu_custom_call.1} parent=1 // pred_check
      _
    $region27: #{tpu_custom_call.1} parent=1 // pred_check_branch
      %38 = sbr.rel (0) target = $region29
    $region28: #{tpu_custom_call.1} parent=1 // pred_region
      %s40 = ssub.s32 2048, 2048
      %41 = vsyncadd [#allocation6], %s40
      %s42 = sshll.u32 [#allocation5], 4
      %s43 = int_to_ptr.vmem [resolvable:$true] %s42
      %48 = dma.hbm_to_vmem [thread:$0]  %s6, 2048, %s43, [#allocation6], 128, 128, 8
    $region29: #{tpu_custom_call.1} parent=1 // pred_fallthru
      _
    // Predicated region
    $region30: #{tpu_custom_call.1} parent=1 // pred_check
      _
    $region31: #{tpu_custom_call.1} parent=1 // pred_check_branch
      %50 = sbr.rel (0) target = $region33
    $region32: #{tpu_custom_call.1} parent=1 // pred_region
      %51 = dma.done [#allocation3], 2048
    $region33: #{tpu_custom_call.1} parent=1 // pred_fallthru
      _
    // Predicated region
    $region34: #{tpu_custom_call.1} parent=1 // pred_check
      _
    $region35: #{tpu_custom_call.1} parent=1 // pred_check_branch
      %53 = sbr.rel (0) target = $region37
    $region36: #{tpu_custom_call.1} parent=1 // pred_region
      %54 = dma.done [#allocation6], 2048
    $region37: #{tpu_custom_call.1} parent=1 // pred_fallthru
      _
    %v55 = vld [vmem:[%s0] sm:$0xff]
    %v56 = vld [vmem:[%s1] sm:$0xff]
    %v57 = vld [vmem:[%s1 + $0x8] sm:$0xff]
    %v58 = vld [vmem:[%s1 + $0x10] sm:$0xff]
    %v59 = vld [vmem:[%s1 + $0x18] sm:$0xff]
    %v60 = vld [vmem:[%s1 + $0x20] sm:$0xff]
    %v61 = vld [vmem:[%s1 + $0x28] sm:$0xff]
    %v62 = vld [vmem:[%s1 + $0x30] sm:$0xff]
    %v63 = vld [vmem:[%s1 + $0x38] sm:$0xff]
    %v64 = vld [vmem:[%s5] sm:$0x7]
    %v65 = vld [vmem:[%s2] sm:$0xff]
    %v66 = vld [vmem:[%s2 + $0x8] sm:$0xff]
    %v67 = vld [vmem:[%s2 + $0x10] sm:$0xff]
    %v68 = vld [vmem:[%s2 + $0x18] sm:$0xff]
    %v69 = vlaneseq
    %v70 = vshrl.u32 %v69, 7
    %v71 = vsub.s32 0, %v70
    %v72 = vrot.slane %v64, %v71
    %vm73 = vcmask 261120
    %v75 = vsel %vm73, %v55, 0
    %77 = vmatprep.subr.mxu0 0.0
    %78 = vmatpush1.msra.mxu0 %v65
    %79 = vmatprep.subr.mxu0 0.0
    %80 = vmatpush1.msra.mxu0 %v66
    %81 = vmatprep.subr.mxu0 0.0
    %82 = vmatpush1.msra.mxu0 %v67
    %83 = vmatprep.subr.mxu0 0.0
    %84 = vmatpush1.msra.mxu0 %v68
    %85 = vmatprep.subr.mxu0 0.0
    %86 = vmatpush1.msra.mxu0 0.0
    %87 = vmatprep.subr.mxu0 0.0
    %88 = vmatpush1.msra.mxu0 0.0
    %89 = vmatprep.subr.mxu0 0.0
    %90 = vmatpush1.msra.mxu0 0.0
    %91 = vmatprep.subr.mxu0 0.0
    %92 = vmatpush1.msra.mxu0 0.0
    %93 = vmatprep.subr.mxu0 0.0
    %94 = vmatpush1.msra.mxu0 0.0
    %95 = vmatprep.subr.mxu0 0.0
    %96 = vmatpush1.msra.mxu0 0.0
    %97 = vmatprep.subr.mxu0 0.0
    %98 = vmatpush1.msra.mxu0 0.0
    %99 = vmatprep.subr.mxu0 0.0
    %100 = vmatpush1.msra.mxu0 0.0
    %101 = vmatprep.subr.mxu0 0.0
    %102 = vmatpush1.msra.mxu0 0.0
    %103 = vmatprep.subr.mxu0 0.0
    %104 = vmatpush1.msra.mxu0 0.0
    %105 = vmatprep.subr.mxu0 0.0
    %106 = vmatpush1.msra.mxu0 0.0
    %107 = vmatprep.subr.mxu0 0.0
    %108 = vmatpush1.msra.mxu0 0.0
    %109 = vmatprep.subr.mxu0 0.0
    %110 = vmatpush1.msra.mxu0 0.0
    %111 = vmatprep.subr.mxu0 0.0
    %112 = vmatpush1.msra.mxu0 0.0
    %113 = vmatprep.subr.mxu0 0.0
    %114 = vmatpush1.msra.mxu0 0.0
    %115 = vmatprep.subr.mxu0 0.0
    %116 = vmatpush1.msra.mxu0 0.0
    %117 = vmatprep.subr.mxu0 0.0
    %118 = vmatpush1.msra.mxu0 0.0
    %119 = vmatprep.subr.mxu0 0.0
    %120 = vmatpush1.msra.mxu0 0.0
    %121 = vmatprep.subr.mxu0 0.0
    %122 = vmatpush1.msra.mxu0 0.0
    %123 = vmatprep.subr.mxu0 0.0
    %124 = vmatpush1.msra.mxu0 0.0
    %125 = vmatprep.subr.mxu0 0.0
    %126 = vmatpush1.msra.mxu0 0.0
    %127 = vmatprep.subr.mxu0 0.0
    %128 = vmatpush1.msra.mxu0 0.0
    %129 = vmatprep.subr.mxu0 0.0
    %130 = vmatpush1.msra.mxu0 0.0
    %131 = vmatprep.subr.mxu0 0.0
    %132 = vmatpush1.msra.mxu0 0.0
    %133 = vmatprep.subr.mxu0 0.0
    %134 = vmatpush1.msra.mxu0 0.0
    %135 = vmatprep.subr.mxu0 0.0
    %136 = vmatpush1.msra.mxu0 0.0
    %137 = vmatprep.subr.mxu0 0.0
    %138 = vmatpush1.msra.mxu0 0.0
    %139 = vmatprep.subr.mxu0 0.0
    %140 = vmatpush1.msra.mxu0 0.0
    %141 = vmatprep.mubr.f32.mxu0 0.0
    %142 = vmatmul.mubr.f32.gmra.mrb[0].mxu0 %v75
    %v143 = vpop.f32.mrb[0].mxu0
    %v144 = vadd.f32 %v72, %v143
    %v145 = vpop.f32.mrb[0].mxu0
    %146 = vdwg.mxu0
    %v147 = vld [vmem:[%s3] sm:$0xff]
    %v148 = vld [vmem:[%s3 + $0x8] sm:$0xff]
    %v149 = vld [vmem:[%s3 + $0x10] sm:$0xff]
    %v150 = vld [vmem:[%s3 + $0x18] sm:$0xff]
    %v151 = vld [vmem:[%s3 + $0x20] sm:$0xff]
    %v152 = vld [vmem:[%s3 + $0x28] sm:$0xff]
    %v153 = vld [vmem:[%s3 + $0x30] sm:$0xff]
    %v154 = vld [vmem:[%s3 + $0x38] sm:$0xff]
    %v156 = vsel %vm73, %v56, 0
    %v159 = vsel %vm73, %v57, 0
    %v162 = vsel %vm73, %v58, 0
    %v165 = vsel %vm73, %v59, 0
    %v168 = vsel %vm73, %v60, 0
    %v171 = vsel %vm73, %v61, 0
    %v174 = vsel %vm73, %v62, 0
    %v177 = vsel %vm73, %v63, 0
    %179 = vmatprep.subr.mxu0 %v148
    %180 = vmatpush1.msra.mxu0 %v147
    %181 = vmatprep.subr.mxu0 %v150
    %182 = vmatpush1.msra.mxu0 %v149
    %183 = vmatprep.subr.mxu0 %v152
    %184 = vmatpush1.msra.mxu0 %v151
    %185 = vmatprep.subr.mxu0 %v154
    %186 = vmatpush1.msra.mxu0 %v153
    %187 = vmatprep.subr.mxu0 0.0
    %188 = vmatpush1.msra.mxu0 0.0
    %189 = vmatprep.subr.mxu0 0.0
    %190 = vmatpush1.msra.mxu0 0.0
    %191 = vmatprep.subr.mxu0 0.0
    %192 = vmatpush1.msra.mxu0 0.0
    %193 = vmatprep.subr.mxu0 0.0
    %194 = vmatpush1.msra.mxu0 0.0
    %195 = vmatprep.subr.mxu0 0.0
    %196 = vmatpush1.msra.mxu0 0.0
    %197 = vmatprep.subr.mxu0 0.0
    %198 = vmatpush1.msra.mxu0 0.0
    %199 = vmatprep.subr.mxu0 0.0
    %200 = vmatpush1.msra.mxu0 0.0
    %201 = vmatprep.subr.mxu0 0.0
    %202 = vmatpush1.msra.mxu0 0.0
    %203 = vmatprep.subr.mxu0 0.0
    %204 = vmatpush1.msra.mxu0 0.0
    %205 = vmatprep.subr.mxu0 0.0
    %206 = vmatpush1.msra.mxu0 0.0
    %207 = vmatprep.subr.mxu0 0.0
    %208 = vmatpush1.msra.mxu0 0.0
    %209 = vmatprep.subr.mxu0 0.0
    %210 = vmatpush1.msra.mxu0 0.0
    %211 = vmatprep.subr.mxu0 0.0
    %212 = vmatpush1.msra.mxu0 0.0
    %213 = vmatprep.subr.mxu0 0.0
    %214 = vmatpush1.msra.mxu0 0.0
    %215 = vmatprep.subr.mxu0 0.0
    %216 = vmatpush1.msra.mxu0 0.0
    %217 = vmatprep.subr.mxu0 0.0
    %218 = vmatpush1.msra.mxu0 0.0
    %219 = vmatprep.subr.mxu0 0.0
    %220 = vmatpush1.msra.mxu0 0.0
    %221 = vmatprep.subr.mxu0 0.0
    %222 = vmatpush1.msra.mxu0 0.0
    %223 = vmatprep.subr.mxu0 0.0
    %224 = vmatpush1.msra.mxu0 0.0
    %225 = vmatprep.subr.mxu0 0.0
    %226 = vmatpush1.msra.mxu0 0.0
    %227 = vmatprep.subr.mxu0 0.0
    %228 = vmatpush1.msra.mxu0 0.0
    %229 = vmatprep.subr.mxu0 0.0
    %230 = vmatpush1.msra.mxu0 0.0
    %231 = vmatprep.subr.mxu0 0.0
    %232 = vmatpush1.msra.mxu0 0.0
    %233 = vmatprep.subr.mxu0 0.0
    %234 = vmatpush1.msra.mxu0 0.0
    %235 = vmatprep.subr.mxu0 0.0
    %236 = vmatpush1.msra.mxu0 0.0
    %237 = vmatprep.subr.mxu0 0.0
    %238 = vmatpush1.msra.mxu0 0.0
    %239 = vmatprep.subr.mxu0 0.0
    %240 = vmatpush1.msra.mxu0 0.0
    %241 = vmatprep.subr.mxu0 0.0
    %242 = vmatpush1.msra.mxu0 0.0
    %243 = vmatprep.mubr.f32.mxu0 0.0
    %244 = vmatmul.mubr.f32.gmra.mrb[0].mxu0 %v156
    %v245 = vpop.f32.mrb[0].mxu0
    %v246 = vadd.f32 0.0, %v245
    %v247 = vpop.f32.mrb[0].mxu0
    %v248 = vadd.f32 0.0, %v247
    %249 = vmatprep.mubr.f32.mxu0 0.0
    %250 = vmatmul.mubr.f32.gmra.mrb[0].mxu0 %v159
    %v251 = vpop.f32.mrb[0].mxu0
    %v252 = vadd.f32 0.0, %v251
    %v253 = vpop.f32.mrb[0].mxu0
    %v254 = vadd.f32 0.0, %v253
    %255 = vmatprep.mubr.f32.mxu0 0.0
    %256 = vmatmul.mubr.f32.gmra.mrb[0].mxu0 %v162
    %v257 = vpop.f32.mrb[0].mxu0
    %v258 = vadd.f32 0.0, %v257
    %v259 = vpop.f32.mrb[0].mxu0
    %v260 = vadd.f32 0.0, %v259
    %261 = vmatprep.mubr.f32.mxu0 0.0
    %262 = vmatmul.mubr.f32.gmra.mrb[0].mxu0 %v165
    %v263 = vpop.f32.mrb[0].mxu0
    %v264 = vadd.f32 0.0, %v263
    %v265 = vpop.f32.mrb[0].mxu0
    %v266 = vadd.f32 0.0, %v265
    %267 = vmatprep.mubr.f32.mxu0 0.0
    %268 = vmatmul.mubr.f32.gmra.mrb[0].mxu0 %v168
    %v269 = vpop.f32.mrb[0].mxu0
    %v270 = vadd.f32 0.0, %v269
    %v271 = vpop.f32.mrb[0].mxu0
    %v272 = vadd.f32 0.0, %v271
    %273 = vmatprep.mubr.f32.mxu0 0.0
    %274 = vmatmul.mubr.f32.gmra.mrb[0].mxu0 %v171
    %v275 = vpop.f32.mrb[0].mxu0
    %v276 = vadd.f32 0.0, %v275
    %v277 = vpop.f32.mrb[0].mxu0
    %v278 = vadd.f32 0.0, %v277
    %279 = vmatprep.mubr.f32.mxu0 0.0
    %280 = vmatmul.mubr.f32.gmra.mrb[0].mxu0 %v174
    %v281 = vpop.f32.mrb[0].mxu0
    %v282 = vadd.f32 0.0, %v281
    %v283 = vpop.f32.mrb[0].mxu0
    %v284 = vadd.f32 0.0, %v283
    %285 = vmatprep.mubr.f32.mxu0 0.0
    %286 = vmatmul.mubr.f32.gmra.mrb[0].mxu0 %v177
    %v287 = vpop.f32.mrb[0].mxu0
    %v288 = vadd.f32 0.0, %v287
    %v289 = vpop.f32.mrb[0].mxu0
    %v290 = vadd.f32 0.0, %v289
    %291 = vdwg.mxu0
    %v293 = vcombine.high %v144, %v144
    %v295 = vunpack.c.l.s4 1966171168
    %v296 = vunpack.c.0.s8 %v295
    %v297 = vlaneseq
    %v298 = vshrl.u32 %v297, 7
    %v299 = vsub.s32 %v296, %v298
    %v300 = vrot.slane %v144, %v299
    %v302 = vunpack.c.l.s4 1966171168
    %v303 = vunpack.c.0.s8 %v302
    %v304 = vlaneseq
    %v305 = vshrl.u32 %v304, 7
    %v306 = vsub.s32 %v303, %v305
    %v307 = vrot.slane %v293, %v306
    %v308 = vcombine.high %v300, %v300
    %v309 = vcombine.high %v307, %v307
    %v311 = vunpack.c.l.s4 1966171168
    %v312 = vunpack.c.0.s8 %v311
    %v313 = vlaneseq
    %v314 = vshrl.u32 %v313, 7
    %v315 = vsub.s32 %v312, %v314
    %v316 = vrot.slane %v300, %v315
    %v318 = vunpack.c.l.s4 1966171168
    %v319 = vunpack.c.0.s8 %v318
    %v320 = vlaneseq
    %v321 = vshrl.u32 %v320, 7
    %v322 = vsub.s32 %v319, %v321
    %v323 = vrot.slane %v307, %v322
    %v325 = vunpack.c.l.s4 1966171168
    %v326 = vunpack.c.0.s8 %v325
    %v327 = vlaneseq
    %v328 = vshrl.u32 %v327, 7
    %v329 = vsub.s32 %v326, %v328
    %v330 = vrot.slane %v308, %v329
    %v332 = vunpack.c.l.s4 1966171168
    %v333 = vunpack.c.0.s8 %v332
    %v334 = vlaneseq
    %v335 = vshrl.u32 %v334, 7
    %v336 = vsub.s32 %v333, %v335
    %v337 = vrot.slane %v309, %v336
    %v338 = vcombine.high %v316, %v316
    %v339 = vcombine.high %v323, %v323
    %v340 = vcombine.high %v330, %v330
    %v341 = vcombine.high %v337, %v337
    %v342 = vlaneseq
    %v343 = vshrl.u32 %v342, 7
    %v344 = vsub.s32 0, %v343
    %v345 = vrot.slane %v316, %v344
    %v346 = vlaneseq
    %v347 = vshrl.u32 %v346, 7
    %v348 = vsub.s32 0, %v347
    %v349 = vrot.slane %v330, %v348
    %v350 = vlaneseq
    %v351 = vshrl.u32 %v350, 7
    %v352 = vsub.s32 0, %v351
    %v353 = vrot.slane %v338, %v352
    %v354 = vlaneseq
    %v355 = vshrl.u32 %v354, 7
    %v356 = vsub.s32 0, %v355
    %v357 = vrot.slane %v340, %v356
    %v358 = vlaneseq
    %v359 = vshrl.u32 %v358, 7
    %v360 = vsub.s32 0, %v359
    %v361 = vrot.slane %v323, %v360
    %v362 = vlaneseq
    %v363 = vshrl.u32 %v362, 7
    %v364 = vsub.s32 0, %v363
    %v365 = vrot.slane %v337, %v364
    %v366 = vlaneseq
    %v367 = vshrl.u32 %v366, 7
    %v368 = vsub.s32 0, %v367
    %v369 = vrot.slane %v339, %v368
    %v370 = vlaneseq
    %v371 = vshrl.u32 %v370, 7
    %v372 = vsub.s32 0, %v371
    %v373 = vrot.slane %v341, %v372
    %v382 = vmul.f32 %v345, %v246
    %v383 = vmul.f32 %v349, %v252
    %v384 = vmul.f32 %v353, %v258
    %v385 = vmul.f32 %v357, %v264
    %v386 = vmul.f32 %v361, %v270
    %v387 = vmul.f32 %v365, %v276
    %v388 = vmul.f32 %v369, %v282
    %v389 = vmul.f32 %v373, %v288
    %v390 = vld [vmem:[#allocation5] sm:$0xff]
    %v391 = vld [vmem:[#allocation5 + $0x8] sm:$0xff]
    %v392 = vld [vmem:[#allocation5 + $0x10] sm:$0xff]
    %v393 = vld [vmem:[#allocation5 + $0x18] sm:$0xff]
    %v394 = vld [vmem:[#allocation5 + $0x20] sm:$0xff]
    %v395 = vld [vmem:[#allocation5 + $0x28] sm:$0xff]
    %v396 = vld [vmem:[#allocation5 + $0x30] sm:$0xff]
    %v397 = vld [vmem:[#allocation5 + $0x38] sm:$0xff]
    %v398 = vld [vmem:[#allocation5 + $0x40] sm:$0xff]
    %v399 = vld [vmem:[#allocation5 + $0x48] sm:$0xff]
    %v400 = vld [vmem:[#allocation5 + $0x50] sm:$0xff]
    %v401 = vld [vmem:[#allocation5 + $0x58] sm:$0xff]
    %v402 = vld [vmem:[#allocation5 + $0x60] sm:$0xff]
    %v403 = vld [vmem:[#allocation5 + $0x68] sm:$0xff]
    %v404 = vld [vmem:[#allocation5 + $0x70] sm:$0xff]
    %v405 = vld [vmem:[#allocation5 + $0x78] sm:$0xff]
    %406 = vmatprep.subr.mxu0 0.0
    %v407 = vand.u32 %v390, 4294901760
    %408 = vmatpush1.msra.mxu0 %v407
    %409 = vmatprep.subr.mxu0 0.0
    %v410 = vand.u32 %v391, 4294901760
    %411 = vmatpush1.msra.mxu0 %v410
    %412 = vmatprep.subr.mxu0 0.0
    %v413 = vand.u32 %v392, 4294901760
    %414 = vmatpush1.msra.mxu0 %v413
    %415 = vmatprep.subr.mxu0 0.0
    %v416 = vand.u32 %v393, 4294901760
    %417 = vmatpush1.msra.mxu0 %v416
    %418 = vmatprep.subr.mxu0 0.0
    %v419 = vand.u32 %v394, 4294901760
    %420 = vmatpush1.msra.mxu0 %v419
    %421 = vmatprep.subr.mxu0 0.0
    %v422 = vand.u32 %v395, 4294901760
    %423 = vmatpush1.msra.mxu0 %v422
    %424 = vmatprep.subr.mxu0 0.0
    %v425 = vand.u32 %v396, 4294901760
    %426 = vmatpush1.msra.mxu0 %v425
    %427 = vmatprep.subr.mxu0 0.0
    %v428 = vand.u32 %v397, 4294901760
    %429 = vmatpush1.msra.mxu0 %v428
    %430 = vmatprep.subr.mxu0 0.0
    %v431 = vand.u32 %v398, 4294901760
    %432 = vmatpush1.msra.mxu0 %v431
    %433 = vmatprep.subr.mxu0 0.0
    %v434 = vand.u32 %v399, 4294901760
    %435 = vmatpush1.msra.mxu0 %v434
    %436 = vmatprep.subr.mxu0 0.0
    %v437 = vand.u32 %v400, 4294901760
    %438 = vmatpush1.msra.mxu0 %v437
    %439 = vmatprep.subr.mxu0 0.0
    %v440 = vand.u32 %v401, 4294901760
    %441 = vmatpush1.msra.mxu0 %v440
    %442 = vmatprep.subr.mxu0 0.0
    %v443 = vand.u32 %v402, 4294901760
    %444 = vmatpush1.msra.mxu0 %v443
    %445 = vmatprep.subr.mxu0 0.0
    %v446 = vand.u32 %v403, 4294901760
    %447 = vmatpush1.msra.mxu0 %v446
    %448 = vmatprep.subr.mxu0 0.0
    %v449 = vand.u32 %v404, 4294901760
    %450 = vmatpush1.msra.mxu0 %v449
    %451 = vmatprep.subr.mxu0 0.0
    %v452 = vand.u32 %v405, 4294901760
    %453 = vmatpush1.msra.mxu0 %v452
    %454 = vmatprep.subr.mxu0 0.0
    %455 = vmatpush1.msra.mxu0 0.0
    %456 = vmatprep.subr.mxu0 0.0
    %457 = vmatpush1.msra.mxu0 0.0
    %458 = vmatprep.subr.mxu0 0.0
    %459 = vmatpush1.msra.mxu0 0.0
    %460 = vmatprep.subr.mxu0 0.0
    %461 = vmatpush1.msra.mxu0 0.0
    %462 = vmatprep.subr.mxu0 0.0
    %463 = vmatpush1.msra.mxu0 0.0
    %464 = vmatprep.subr.mxu0 0.0
    %465 = vmatpush1.msra.mxu0 0.0
    %466 = vmatprep.subr.mxu0 0.0
    %467 = vmatpush1.msra.mxu0 0.0
    %468 = vmatprep.subr.mxu0 0.0
    %469 = vmatpush1.msra.mxu0 0.0
    %470 = vmatprep.subr.mxu0 0.0
    %471 = vmatpush1.msra.mxu0 0.0
    %472 = vmatprep.subr.mxu0 0.0
    %473 = vmatpush1.msra.mxu0 0.0
    %474 = vmatprep.subr.mxu0 0.0
    %475 = vmatpush1.msra.mxu0 0.0
    %476 = vmatprep.subr.mxu0 0.0
    %477 = vmatpush1.msra.mxu0 0.0
    %478 = vmatprep.subr.mxu0 0.0
    %479 = vmatpush1.msra.mxu0 0.0
    %480 = vmatprep.subr.mxu0 0.0
    %481 = vmatpush1.msra.mxu0 0.0
    %482 = vmatprep.subr.mxu0 0.0
    %483 = vmatpush1.msra.mxu0 0.0
    %484 = vmatprep.subr.mxu0 0.0
    %485 = vmatpush1.msra.mxu0 0.0
    %486 = vmatprep.mubr.f32.mxu0 0.0
    %v487 = vand.u32 %v382, 4294901760
    %v488 = vsub.f32 %v382, %v487
    %v489 = vand.u32 %v488, 4294901760
    %v490 = vsub.f32 %v488, %v489
    %v491 = vand.u32 %v490, 4294901760
    %492 = vmatmul.mubr.f32.gmra.mrb[0].mxu0 %v491
    %v493 = vpop.f32.mrb[0].mxu0
    %v494 = vadd.f32 0.0, %v493
    %v495 = vpop.f32.mrb[0].mxu0
    %496 = vmatprep.mubr.f32.mxu0 0.0
    %v497 = vand.u32 %v383, 4294901760
    %v498 = vsub.f32 %v383, %v497
    %v499 = vand.u32 %v498, 4294901760
    %v500 = vsub.f32 %v498, %v499
    %v501 = vand.u32 %v500, 4294901760
    %502 = vmatmul.mubr.f32.gmra.mrb[0].mxu0 %v501
    %v503 = vpop.f32.mrb[0].mxu0
    %v504 = vadd.f32 0.0, %v503
    %v505 = vpop.f32.mrb[0].mxu0
    %506 = vmatprep.mubr.f32.mxu0 0.0
    %v507 = vand.u32 %v384, 4294901760
    %v508 = vsub.f32 %v384, %v507
    %v509 = vand.u32 %v508, 4294901760
    %v510 = vsub.f32 %v508, %v509
    %v511 = vand.u32 %v510, 4294901760
    %512 = vmatmul.mubr.f32.gmra.mrb[0].mxu0 %v511
    %v513 = vpop.f32.mrb[0].mxu0
    %v514 = vadd.f32 0.0, %v513
    %v515 = vpop.f32.mrb[0].mxu0
    %516 = vmatprep.mubr.f32.mxu0 0.0
    %v517 = vand.u32 %v385, 4294901760
    %v518 = vsub.f32 %v385, %v517
    %v519 = vand.u32 %v518, 4294901760
    %v520 = vsub.f32 %v518, %v519
    %v521 = vand.u32 %v520, 4294901760
    %522 = vmatmul.mubr.f32.gmra.mrb[0].mxu0 %v521
    %v523 = vpop.f32.mrb[0].mxu0
    %v524 = vadd.f32 0.0, %v523
    %v525 = vpop.f32.mrb[0].mxu0
    %526 = vmatprep.mubr.f32.mxu0 0.0
    %v527 = vand.u32 %v386, 4294901760
    %v528 = vsub.f32 %v386, %v527
    %v529 = vand.u32 %v528, 4294901760
    %v530 = vsub.f32 %v528, %v529
    %v531 = vand.u32 %v530, 4294901760
    %532 = vmatmul.mubr.f32.gmra.mrb[0].mxu0 %v531
    %v533 = vpop.f32.mrb[0].mxu0
    %v534 = vadd.f32 0.0, %v533
    %v535 = vpop.f32.mrb[0].mxu0
    %536 = vmatprep.mubr.f32.mxu0 0.0
    %v537 = vand.u32 %v387, 4294901760
    %v538 = vsub.f32 %v387, %v537
    %v539 = vand.u32 %v538, 4294901760
    %v540 = vsub.f32 %v538, %v539
    %v541 = vand.u32 %v540, 4294901760
    %542 = vmatmul.mubr.f32.gmra.mrb[0].mxu0 %v541
    %v543 = vpop.f32.mrb[0].mxu0
    %v544 = vadd.f32 0.0, %v543
    %v545 = vpop.f32.mrb[0].mxu0
    %546 = vmatprep.mubr.f32.mxu0 0.0
    %v547 = vand.u32 %v388, 4294901760
    %v548 = vsub.f32 %v388, %v547
    %v549 = vand.u32 %v548, 4294901760
    %v550 = vsub.f32 %v548, %v549
    %v551 = vand.u32 %v550, 4294901760
    %552 = vmatmul.mubr.f32.gmra.mrb[0].mxu0 %v551
    %v553 = vpop.f32.mrb[0].mxu0
    %v554 = vadd.f32 0.0, %v553
    %v555 = vpop.f32.mrb[0].mxu0
    %556 = vmatprep.mubr.f32.mxu0 0.0
    %v557 = vand.u32 %v389, 4294901760
    %v558 = vsub.f32 %v389, %v557
    %v559 = vand.u32 %v558, 4294901760
    %v560 = vsub.f32 %v558, %v559
    %v561 = vand.u32 %v560, 4294901760
    %562 = vmatmul.mubr.f32.gmra.mrb[0].mxu0 %v561
    %v563 = vpop.f32.mrb[0].mxu0
    %v564 = vadd.f32 0.0, %v563
    %v565 = vpop.f32.mrb[0].mxu0
    %566 = vdwg.mxu0
    %567 = vmatprep.subr.mxu0 0.0
    %v568 = vand.u32 %v390, 4294901760
    %v569 = vsub.f32 %v390, %v568
    %v570 = vand.u32 %v569, 4294901760
    %v571 = vsub.f32 %v569, %v570
    %v572 = vand.u32 %v571, 4294901760
    %573 = vmatpush1.msra.mxu0 %v572
    %574 = vmatprep.subr.mxu0 0.0
    %v575 = vand.u32 %v391, 4294901760
    %v576 = vsub.f32 %v391, %v575
    %v577 = vand.u32 %v576, 4294901760
    %v578 = vsub.f32 %v576, %v577
    %v579 = vand.u32 %v578, 4294901760
    %580 = vmatpush1.msra.mxu0 %v579
    %581 = vmatprep.subr.mxu0 0.0
    %v582 = vand.u32 %v392, 4294901760
    %v583 = vsub.f32 %v392, %v582
    %v584 = vand.u32 %v583, 4294901760
    %v585 = vsub.f32 %v583, %v584
    %v586 = vand.u32 %v585, 4294901760
    %587 = vmatpush1.msra.mxu0 %v586
    %588 = vmatprep.subr.mxu0 0.0
    %v589 = vand.u32 %v393, 4294901760
    %v590 = vsub.f32 %v393, %v589
    %v591 = vand.u32 %v590, 4294901760
    %v592 = vsub.f32 %v590, %v591
    %v593 = vand.u32 %v592, 4294901760
    %594 = vmatpush1.msra.mxu0 %v593
    %595 = vmatprep.subr.mxu0 0.0
    %v596 = vand.u32 %v394, 4294901760
    %v597 = vsub.f32 %v394, %v596
    %v598 = vand.u32 %v597, 4294901760
    %v599 = vsub.f32 %v597, %v598
    %v600 = vand.u32 %v599, 4294901760
    %601 = vmatpush1.msra.mxu0 %v600
    %602 = vmatprep.subr.mxu0 0.0
    %v603 = vand.u32 %v395, 4294901760
    %v604 = vsub.f32 %v395, %v603
    %v605 = vand.u32 %v604, 4294901760
    %v606 = vsub.f32 %v604, %v605
    %v607 = vand.u32 %v606, 4294901760
    %608 = vmatpush1.msra.mxu0 %v607
    %609 = vmatprep.subr.mxu0 0.0
    %v610 = vand.u32 %v396, 4294901760
    %v611 = vsub.f32 %v396, %v610
    %v612 = vand.u32 %v611, 4294901760
    %v613 = vsub.f32 %v611, %v612
    %v614 = vand.u32 %v613, 4294901760
    %615 = vmatpush1.msra.mxu0 %v614
    %616 = vmatprep.subr.mxu0 0.0
    %v617 = vand.u32 %v397, 4294901760
    %v618 = vsub.f32 %v397, %v617
    %v619 = vand.u32 %v618, 4294901760
    %v620 = vsub.f32 %v618, %v619
    %v621 = vand.u32 %v620, 4294901760
    %622 = vmatpush1.msra.mxu0 %v621
    %623 = vmatprep.subr.mxu0 0.0
    %v624 = vand.u32 %v398, 4294901760
    %v625 = vsub.f32 %v398, %v624
    %v626 = vand.u32 %v625, 4294901760
    %v627 = vsub.f32 %v625, %v626
    %v628 = vand.u32 %v627, 4294901760
    %629 = vmatpush1.msra.mxu0 %v628
    %630 = vmatprep.subr.mxu0 0.0
    %v631 = vand.u32 %v399, 4294901760
    %v632 = vsub.f32 %v399, %v631
    %v633 = vand.u32 %v632, 4294901760
    %v634 = vsub.f32 %v632, %v633
    %v635 = vand.u32 %v634, 4294901760
    %636 = vmatpush1.msra.mxu0 %v635
    %637 = vmatprep.subr.mxu0 0.0
    %v638 = vand.u32 %v400, 4294901760
    %v639 = vsub.f32 %v400, %v638
    %v640 = vand.u32 %v639, 4294901760
    %v641 = vsub.f32 %v639, %v640
    %v642 = vand.u32 %v641, 4294901760
    %643 = vmatpush1.msra.mxu0 %v642
    %644 = vmatprep.subr.mxu0 0.0
    %v645 = vand.u32 %v401, 4294901760
    %v646 = vsub.f32 %v401, %v645
    %v647 = vand.u32 %v646, 4294901760
    %v648 = vsub.f32 %v646, %v647
    %v649 = vand.u32 %v648, 4294901760
    %650 = vmatpush1.msra.mxu0 %v649
    %651 = vmatprep.subr.mxu0 0.0
    %v652 = vand.u32 %v402, 4294901760
    %v653 = vsub.f32 %v402, %v652
    %v654 = vand.u32 %v653, 4294901760
    %v655 = vsub.f32 %v653, %v654
    %v656 = vand.u32 %v655, 4294901760
    %657 = vmatpush1.msra.mxu0 %v656
    %658 = vmatprep.subr.mxu0 0.0
    %v659 = vand.u32 %v403, 4294901760
    %v660 = vsub.f32 %v403, %v659
    %v661 = vand.u32 %v660, 4294901760
    %v662 = vsub.f32 %v660, %v661
    %v663 = vand.u32 %v662, 4294901760
    %664 = vmatpush1.msra.mxu0 %v663
    %665 = vmatprep.subr.mxu0 0.0
    %v666 = vand.u32 %v404, 4294901760
    %v667 = vsub.f32 %v404, %v666
    %v668 = vand.u32 %v667, 4294901760
    %v669 = vsub.f32 %v667, %v668
    %v670 = vand.u32 %v669, 4294901760
    %671 = vmatpush1.msra.mxu0 %v670
    %672 = vmatprep.subr.mxu0 0.0
    %v673 = vand.u32 %v405, 4294901760
    %v674 = vsub.f32 %v405, %v673
    %v675 = vand.u32 %v674, 4294901760
    %v676 = vsub.f32 %v674, %v675
    %v677 = vand.u32 %v676, 4294901760
    %678 = vmatpush1.msra.mxu0 %v677
    %679 = vmatprep.subr.mxu0 0.0
    %680 = vmatpush1.msra.mxu0 0.0
    %681 = vmatprep.subr.mxu0 0.0
    %682 = vmatpush1.msra.mxu0 0.0
    %683 = vmatprep.subr.mxu0 0.0
    %684 = vmatpush1.msra.mxu0 0.0
    %685 = vmatprep.subr.mxu0 0.0
    %686 = vmatpush1.msra.mxu0 0.0
    %687 = vmatprep.subr.mxu0 0.0
    %688 = vmatpush1.msra.mxu0 0.0
    %689 = vmatprep.subr.mxu0 0.0
    %690 = vmatpush1.msra.mxu0 0.0
    %691 = vmatprep.subr.mxu0 0.0
    %692 = vmatpush1.msra.mxu0 0.0
    %693 = vmatprep.subr.mxu0 0.0
    %694 = vmatpush1.msra.mxu0 0.0
    %695 = vmatprep.subr.mxu0 0.0
    %696 = vmatpush1.msra.mxu0 0.0
    %697 = vmatprep.subr.mxu0 0.0
    %698 = vmatpush1.msra.mxu0 0.0
    %699 = vmatprep.subr.mxu0 0.0
    %700 = vmatpush1.msra.mxu0 0.0
    %701 = vmatprep.subr.mxu0 0.0
    %702 = vmatpush1.msra.mxu0 0.0
    %703 = vmatprep.subr.mxu0 0.0
    %704 = vmatpush1.msra.mxu0 0.0
    %705 = vmatprep.subr.mxu0 0.0
    %706 = vmatpush1.msra.mxu0 0.0
    %707 = vmatprep.subr.mxu0 0.0
    %708 = vmatpush1.msra.mxu0 0.0
    %709 = vmatprep.subr.mxu0 0.0
    %710 = vmatpush1.msra.mxu0 0.0
    %711 = vmatprep.mubr.f32.mxu0 0.0
    %v712 = vand.u32 %v382, 4294901760
    %713 = vmatmul.mubr.f32.gmra.mrb[0].mxu0 %v712
    %v714 = vpop.f32.mrb[0].mxu0
    %v715 = vadd.f32 %v494, %v714
    %v716 = vpop.f32.mrb[0].mxu0
    %717 = vmatprep.mubr.f32.mxu0 0.0
    %v718 = vand.u32 %v383, 4294901760
    %719 = vmatmul.mubr.f32.gmra.mrb[0].mxu0 %v718
    %v720 = vpop.f32.mrb[0].mxu0
    %v721 = vadd.f32 %v504, %v720
    %v722 = vpop.f32.mrb[0].mxu0
    %723 = vmatprep.mubr.f32.mxu0 0.0
    %v724 = vand.u32 %v384, 4294901760
    %725 = vmatmul.mubr.f32.gmra.mrb[0].mxu0 %v724
    %v726 = vpop.f32.mrb[0].mxu0
    %v727 = vadd.f32 %v514, %v726
    %v728 = vpop.f32.mrb[0].mxu0
    %729 = vmatprep.mubr.f32.mxu0 0.0
    %v730 = vand.u32 %v385, 4294901760
    %731 = vmatmul.mubr.f32.gmra.mrb[0].mxu0 %v730
    %v732 = vpop.f32.mrb[0].mxu0
    %v733 = vadd.f32 %v524, %v732
    %v734 = vpop.f32.mrb[0].mxu0
    %735 = vmatprep.mubr.f32.mxu0 0.0
    %v736 = vand.u32 %v386, 4294901760
    %737 = vmatmul.mubr.f32.gmra.mrb[0].mxu0 %v736
    %v738 = vpop.f32.mrb[0].mxu0
    %v739 = vadd.f32 %v534, %v738
    %v740 = vpop.f32.mrb[0].mxu0
    %741 = vmatprep.mubr.f32.mxu0 0.0
    %v742 = vand.u32 %v387, 4294901760
    %743 = vmatmul.mubr.f32.gmra.mrb[0].mxu0 %v742
    %v744 = vpop.f32.mrb[0].mxu0
    %v745 = vadd.f32 %v544, %v744
    %v746 = vpop.f32.mrb[0].mxu0
    %747 = vmatprep.mubr.f32.mxu0 0.0
    %v748 = vand.u32 %v388, 4294901760
    %749 = vmatmul.mubr.f32.gmra.mrb[0].mxu0 %v748
    %v750 = vpop.f32.mrb[0].mxu0
    %v751 = vadd.f32 %v554, %v750
    %v752 = vpop.f32.mrb[0].mxu0
    %753 = vmatprep.mubr.f32.mxu0 0.0
    %v754 = vand.u32 %v389, 4294901760
    %755 = vmatmul.mubr.f32.gmra.mrb[0].mxu0 %v754
    %v756 = vpop.f32.mrb[0].mxu0
    %v757 = vadd.f32 %v564, %v756
    %v758 = vpop.f32.mrb[0].mxu0
    %759 = vdwg.mxu0
    %760 = vmatprep.subr.mxu0 0.0
    %v761 = vand.u32 %v390, 4294901760
    %v762 = vsub.f32 %v390, %v761
    %763 = vmatpush1.msra.mxu0 %v762
    %764 = vmatprep.subr.mxu0 0.0
    %v765 = vand.u32 %v391, 4294901760
    %v766 = vsub.f32 %v391, %v765
    %767 = vmatpush1.msra.mxu0 %v766
    %768 = vmatprep.subr.mxu0 0.0
    %v769 = vand.u32 %v392, 4294901760
    %v770 = vsub.f32 %v392, %v769
    %771 = vmatpush1.msra.mxu0 %v770
    %772 = vmatprep.subr.mxu0 0.0
    %v773 = vand.u32 %v393, 4294901760
    %v774 = vsub.f32 %v393, %v773
    %775 = vmatpush1.msra.mxu0 %v774
    %776 = vmatprep.subr.mxu0 0.0
    %v777 = vand.u32 %v394, 4294901760
    %v778 = vsub.f32 %v394, %v777
    %779 = vmatpush1.msra.mxu0 %v778
    %780 = vmatprep.subr.mxu0 0.0
    %v781 = vand.u32 %v395, 4294901760
    %v782 = vsub.f32 %v395, %v781
    %783 = vmatpush1.msra.mxu0 %v782
    %784 = vmatprep.subr.mxu0 0.0
    %v785 = vand.u32 %v396, 4294901760
    %v786 = vsub.f32 %v396, %v785
    %787 = vmatpush1.msra.mxu0 %v786
    %788 = vmatprep.subr.mxu0 0.0
    %v789 = vand.u32 %v397, 4294901760
    %v790 = vsub.f32 %v397, %v789
    %791 = vmatpush1.msra.mxu0 %v790
    %792 = vmatprep.subr.mxu0 0.0
    %v793 = vand.u32 %v398, 4294901760
    %v794 = vsub.f32 %v398, %v793
    %795 = vmatpush1.msra.mxu0 %v794
    %796 = vmatprep.subr.mxu0 0.0
    %v797 = vand.u32 %v399, 4294901760
    %v798 = vsub.f32 %v399, %v797
    %799 = vmatpush1.msra.mxu0 %v798
    %800 = vmatprep.subr.mxu0 0.0
    %v801 = vand.u32 %v400, 4294901760
    %v802 = vsub.f32 %v400, %v801
    %803 = vmatpush1.msra.mxu0 %v802
    %804 = vmatprep.subr.mxu0 0.0
    %v805 = vand.u32 %v401, 4294901760
    %v806 = vsub.f32 %v401, %v805
    %807 = vmatpush1.msra.mxu0 %v806
    %808 = vmatprep.subr.mxu0 0.0
    %v809 = vand.u32 %v402, 4294901760
    %v810 = vsub.f32 %v402, %v809
    %811 = vmatpush1.msra.mxu0 %v810
    %812 = vmatprep.subr.mxu0 0.0
    %v813 = vand.u32 %v403, 4294901760
    %v814 = vsub.f32 %v403, %v813
    %815 = vmatpush1.msra.mxu0 %v814
    %816 = vmatprep.subr.mxu0 0.0
    %v817 = vand.u32 %v404, 4294901760
    %v818 = vsub.f32 %v404, %v817
    %819 = vmatpush1.msra.mxu0 %v818
    %820 = vmatprep.subr.mxu0 0.0
    %v821 = vand.u32 %v405, 4294901760
    %v822 = vsub.f32 %v405, %v821
    %823 = vmatpush1.msra.mxu0 %v822
    %824 = vmatprep.subr.mxu0 0.0
    %825 = vmatpush1.msra.mxu0 0.0
    %826 = vmatprep.subr.mxu0 0.0
    %827 = vmatpush1.msra.mxu0 0.0
    %828 = vmatprep.subr.mxu0 0.0
    %829 = vmatpush1.msra.mxu0 0.0
    %830 = vmatprep.subr.mxu0 0.0
    %831 = vmatpush1.msra.mxu0 0.0
    %832 = vmatprep.subr.mxu0 0.0
    %833 = vmatpush1.msra.mxu0 0.0
    %834 = vmatprep.subr.mxu0 0.0
    %835 = vmatpush1.msra.mxu0 0.0
    %836 = vmatprep.subr.mxu0 0.0
    %837 = vmatpush1.msra.mxu0 0.0
    %838 = vmatprep.subr.mxu0 0.0
    %839 = vmatpush1.msra.mxu0 0.0
    %840 = vmatprep.subr.mxu0 0.0
    %841 = vmatpush1.msra.mxu0 0.0
    %842 = vmatprep.subr.mxu0 0.0
    %843 = vmatpush1.msra.mxu0 0.0
    %844 = vmatprep.subr.mxu0 0.0
    %845 = vmatpush1.msra.mxu0 0.0
    %846 = vmatprep.subr.mxu0 0.0
    %847 = vmatpush1.msra.mxu0 0.0
    %848 = vmatprep.subr.mxu0 0.0
    %849 = vmatpush1.msra.mxu0 0.0
    %850 = vmatprep.subr.mxu0 0.0
    %851 = vmatpush1.msra.mxu0 0.0
    %852 = vmatprep.subr.mxu0 0.0
    %853 = vmatpush1.msra.mxu0 0.0
    %854 = vmatprep.subr.mxu0 0.0
    %855 = vmatpush1.msra.mxu0 0.0
    %856 = vmatprep.mubr.f32.mxu0 0.0
    %v857 = vand.u32 %v382, 4294901760
    %v858 = vsub.f32 %v382, %v857
    %859 = vmatmul.mubr.f32.gmra.mrb[0].mxu0 %v858
    %v860 = vpop.f32.mrb[0].mxu0
    %v861 = vadd.f32 %v715, %v860
    %v862 = vpop.f32.mrb[0].mxu0
    %863 = vmatprep.mubr.f32.mxu0 0.0
    %v864 = vand.u32 %v383, 4294901760
    %v865 = vsub.f32 %v383, %v864
    %866 = vmatmul.mubr.f32.gmra.mrb[0].mxu0 %v865
    %v867 = vpop.f32.mrb[0].mxu0
    %v868 = vadd.f32 %v721, %v867
    %v869 = vpop.f32.mrb[0].mxu0
    %870 = vmatprep.mubr.f32.mxu0 0.0
    %v871 = vand.u32 %v384, 4294901760
    %v872 = vsub.f32 %v384, %v871
    %873 = vmatmul.mubr.f32.gmra.mrb[0].mxu0 %v872
    %v874 = vpop.f32.mrb[0].mxu0
    %v875 = vadd.f32 %v727, %v874
    %v876 = vpop.f32.mrb[0].mxu0
    %877 = vmatprep.mubr.f32.mxu0 0.0
    %v878 = vand.u32 %v385, 4294901760
    %v879 = vsub.f32 %v385, %v878
    %880 = vmatmul.mubr.f32.gmra.mrb[0].mxu0 %v879
    %v881 = vpop.f32.mrb[0].mxu0
    %v882 = vadd.f32 %v733, %v881
    %v883 = vpop.f32.mrb[0].mxu0
    %884 = vmatprep.mubr.f32.mxu0 0.0
    %v885 = vand.u32 %v386, 4294901760
    %v886 = vsub.f32 %v386, %v885
    %887 = vmatmul.mubr.f32.gmra.mrb[0].mxu0 %v886
    %v888 = vpop.f32.mrb[0].mxu0
    %v889 = vadd.f32 %v739, %v888
    %v890 = vpop.f32.mrb[0].mxu0
    %891 = vmatprep.mubr.f32.mxu0 0.0
    %v892 = vand.u32 %v387, 4294901760
    %v893 = vsub.f32 %v387, %v892
    %894 = vmatmul.mubr.f32.gmra.mrb[0].mxu0 %v893
    %v895 = vpop.f32.mrb[0].mxu0
    %v896 = vadd.f32 %v745, %v895
    %v897 = vpop.f32.mrb[0].mxu0
    %898 = vmatprep.mubr.f32.mxu0 0.0
    %v899 = vand.u32 %v388, 4294901760
    %v900 = vsub.f32 %v388, %v899
    %901 = vmatmul.mubr.f32.gmra.mrb[0].mxu0 %v900
    %v902 = vpop.f32.mrb[0].mxu0
    %v903 = vadd.f32 %v751, %v902
    %v904 = vpop.f32.mrb[0].mxu0
    %905 = vmatprep.mubr.f32.mxu0 0.0
    %v906 = vand.u32 %v389, 4294901760
    %v907 = vsub.f32 %v389, %v906
    %908 = vmatmul.mubr.f32.gmra.mrb[0].mxu0 %v907
    %v909 = vpop.f32.mrb[0].mxu0
    %v910 = vadd.f32 %v757, %v909
    %v911 = vpop.f32.mrb[0].mxu0
    %912 = vdwg.mxu0
    %913 = vmatprep.subr.mxu0 0.0
    %v914 = vand.u32 %v390, 4294901760
    %915 = vmatpush1.msra.mxu0 %v914
    %916 = vmatprep.subr.mxu0 0.0
    %v917 = vand.u32 %v391, 4294901760
    %918 = vmatpush1.msra.mxu0 %v917
    %919 = vmatprep.subr.mxu0 0.0
    %v920 = vand.u32 %v392, 4294901760
    %921 = vmatpush1.msra.mxu0 %v920
    %922 = vmatprep.subr.mxu0 0.0
    %v923 = vand.u32 %v393, 4294901760
    %924 = vmatpush1.msra.mxu0 %v923
    %925 = vmatprep.subr.mxu0 0.0
    %v926 = vand.u32 %v394, 4294901760
    %927 = vmatpush1.msra.mxu0 %v926
    %928 = vmatprep.subr.mxu0 0.0
    %v929 = vand.u32 %v395, 4294901760
    %930 = vmatpush1.msra.mxu0 %v929
    %931 = vmatprep.subr.mxu0 0.0
    %v932 = vand.u32 %v396, 4294901760
    %933 = vmatpush1.msra.mxu0 %v932
    %934 = vmatprep.subr.mxu0 0.0
    %v935 = vand.u32 %v397, 4294901760
    %936 = vmatpush1.msra.mxu0 %v935
    %937 = vmatprep.subr.mxu0 0.0
    %v938 = vand.u32 %v398, 4294901760
    %939 = vmatpush1.msra.mxu0 %v938
    %940 = vmatprep.subr.mxu0 0.0
    %v941 = vand.u32 %v399, 4294901760
    %942 = vmatpush1.msra.mxu0 %v941
    %943 = vmatprep.subr.mxu0 0.0
    %v944 = vand.u32 %v400, 4294901760
    %945 = vmatpush1.msra.mxu0 %v944
    %946 = vmatprep.subr.mxu0 0.0
    %v947 = vand.u32 %v401, 4294901760
    %948 = vmatpush1.msra.mxu0 %v947
    %949 = vmatprep.subr.mxu0 0.0
    %v950 = vand.u32 %v402, 4294901760
    %951 = vmatpush1.msra.mxu0 %v950
    %952 = vmatprep.subr.mxu0 0.0
    %v953 = vand.u32 %v403, 4294901760
    %954 = vmatpush1.msra.mxu0 %v953
    %955 = vmatprep.subr.mxu0 0.0
    %v956 = vand.u32 %v404, 4294901760
    %957 = vmatpush1.msra.mxu0 %v956
    %958 = vmatprep.subr.mxu0 0.0
    %v959 = vand.u32 %v405, 4294901760
    %960 = vmatpush1.msra.mxu0 %v959
    %961 = vmatprep.subr.mxu0 0.0
    %962 = vmatpush1.msra.mxu0 0.0
    %963 = vmatprep.subr.mxu0 0.0
    %964 = vmatpush1.msra.mxu0 0.0
    %965 = vmatprep.subr.mxu0 0.0
    %966 = vmatpush1.msra.mxu0 0.0
    %967 = vmatprep.subr.mxu0 0.0
    %968 = vmatpush1.msra.mxu0 0.0
    %969 = vmatprep.subr.mxu0 0.0
    %970 = vmatpush1.msra.mxu0 0.0
    %971 = vmatprep.subr.mxu0 0.0
    %972 = vmatpush1.msra.mxu0 0.0
    %973 = vmatprep.subr.mxu0 0.0
    %974 = vmatpush1.msra.mxu0 0.0
    %975 = vmatprep.subr.mxu0 0.0
    %976 = vmatpush1.msra.mxu0 0.0
    %977 = vmatprep.subr.mxu0 0.0
    %978 = vmatpush1.msra.mxu0 0.0
    %979 = vmatprep.subr.mxu0 0.0
    %980 = vmatpush1.msra.mxu0 0.0
    %981 = vmatprep.subr.mxu0 0.0
    %982 = vmatpush1.msra.mxu0 0.0
    %983 = vmatprep.subr.mxu0 0.0
    %984 = vmatpush1.msra.mxu0 0.0
    %985 = vmatprep.subr.mxu0 0.0
    %986 = vmatpush1.msra.mxu0 0.0
    %987 = vmatprep.subr.mxu0 0.0
    %988 = vmatpush1.msra.mxu0 0.0
    %989 = vmatprep.subr.mxu0 0.0
    %990 = vmatpush1.msra.mxu0 0.0
    %991 = vmatprep.subr.mxu0 0.0
    %992 = vmatpush1.msra.mxu0 0.0
    %993 = vmatprep.mubr.f32.mxu0 0.0
    %v994 = vand.u32 %v382, 4294901760
    %v995 = vsub.f32 %v382, %v994
    %v996 = vand.u32 %v995, 4294901760
    %997 = vmatmul.mubr.f32.gmra.mrb[0].mxu0 %v996
    %v998 = vpop.f32.mrb[0].mxu0
    %v999 = vadd.f32 %v861, %v998
    %v1000 = vpop.f32.mrb[0].mxu0
    %1001 = vmatprep.mubr.f32.mxu0 0.0
    %v1002 = vand.u32 %v383, 4294901760
    %v1003 = vsub.f32 %v383, %v1002
    %v1004 = vand.u32 %v1003, 4294901760
    %1005 = vmatmul.mubr.f32.gmra.mrb[0].mxu0 %v1004
    %v1006 = vpop.f32.mrb[0].mxu0
    %v1007 = vadd.f32 %v868, %v1006
    %v1008 = vpop.f32.mrb[0].mxu0
    %1009 = vmatprep.mubr.f32.mxu0 0.0
    %v1010 = vand.u32 %v384, 4294901760
    %v1011 = vsub.f32 %v384, %v1010
    %v1012 = vand.u32 %v1011, 4294901760
    %1013 = vmatmul.mubr.f32.gmra.mrb[0].mxu0 %v1012
    %v1014 = vpop.f32.mrb[0].mxu0
    %v1015 = vadd.f32 %v875, %v1014
    %v1016 = vpop.f32.mrb[0].mxu0
    %1017 = vmatprep.mubr.f32.mxu0 0.0
    %v1018 = vand.u32 %v385, 4294901760
    %v1019 = vsub.f32 %v385, %v1018
    %v1020 = vand.u32 %v1019, 4294901760
    %1021 = vmatmul.mubr.f32.gmra.mrb[0].mxu0 %v1020
    %v1022 = vpop.f32.mrb[0].mxu0
    %v1023 = vadd.f32 %v882, %v1022
    %v1024 = vpop.f32.mrb[0].mxu0
    %1025 = vmatprep.mubr.f32.mxu0 0.0
    %v1026 = vand.u32 %v386, 4294901760
    %v1027 = vsub.f32 %v386, %v1026
    %v1028 = vand.u32 %v1027, 4294901760
    %1029 = vmatmul.mubr.f32.gmra.mrb[0].mxu0 %v1028
    %v1030 = vpop.f32.mrb[0].mxu0
    %v1031 = vadd.f32 %v889, %v1030
    %v1032 = vpop.f32.mrb[0].mxu0
    %1033 = vmatprep.mubr.f32.mxu0 0.0
    %v1034 = vand.u32 %v387, 4294901760
    %v1035 = vsub.f32 %v387, %v1034
    %v1036 = vand.u32 %v1035, 4294901760
    %1037 = vmatmul.mubr.f32.gmra.mrb[0].mxu0 %v1036
    %v1038 = vpop.f32.mrb[0].mxu0
    %v1039 = vadd.f32 %v896, %v1038
    %v1040 = vpop.f32.mrb[0].mxu0
    %1041 = vmatprep.mubr.f32.mxu0 0.0
    %v1042 = vand.u32 %v388, 4294901760
    %v1043 = vsub.f32 %v388, %v1042
    %v1044 = vand.u32 %v1043, 4294901760
    %1045 = vmatmul.mubr.f32.gmra.mrb[0].mxu0 %v1044
    %v1046 = vpop.f32.mrb[0].mxu0
    %v1047 = vadd.f32 %v903, %v1046
    %v1048 = vpop.f32.mrb[0].mxu0
    %1049 = vmatprep.mubr.f32.mxu0 0.0
    %v1050 = vand.u32 %v389, 4294901760
    %v1051 = vsub.f32 %v389, %v1050
    %v1052 = vand.u32 %v1051, 4294901760
    %1053 = vmatmul.mubr.f32.gmra.mrb[0].mxu0 %v1052
    %v1054 = vpop.f32.mrb[0].mxu0
    %v1055 = vadd.f32 %v910, %v1054
    %v1056 = vpop.f32.mrb[0].mxu0
    %1057 = vdwg.mxu0
    %1058 = vmatprep.subr.mxu0 0.0
    %v1059 = vand.u32 %v390, 4294901760
    %v1060 = vsub.f32 %v390, %v1059
    %v1061 = vand.u32 %v1060, 4294901760
    %1062 = vmatpush1.msra.mxu0 %v1061
    %1063 = vmatprep.subr.mxu0 0.0
    %v1064 = vand.u32 %v391, 4294901760
    %v1065 = vsub.f32 %v391, %v1064
    %v1066 = vand.u32 %v1065, 4294901760
    %1067 = vmatpush1.msra.mxu0 %v1066
    %1068 = vmatprep.subr.mxu0 0.0
    %v1069 = vand.u32 %v392, 4294901760
    %v1070 = vsub.f32 %v392, %v1069
    %v1071 = vand.u32 %v1070, 4294901760
    %1072 = vmatpush1.msra.mxu0 %v1071
    %1073 = vmatprep.subr.mxu0 0.0
    %v1074 = vand.u32 %v393, 4294901760
    %v1075 = vsub.f32 %v393, %v1074
    %v1076 = vand.u32 %v1075, 4294901760
    %1077 = vmatpush1.msra.mxu0 %v1076
    %1078 = vmatprep.subr.mxu0 0.0
    %v1079 = vand.u32 %v394, 4294901760
    %v1080 = vsub.f32 %v394, %v1079
    %v1081 = vand.u32 %v1080, 4294901760
    %1082 = vmatpush1.msra.mxu0 %v1081
    %1083 = vmatprep.subr.mxu0 0.0
    %v1084 = vand.u32 %v395, 4294901760
    %v1085 = vsub.f32 %v395, %v1084
    %v1086 = vand.u32 %v1085, 4294901760
    %1087 = vmatpush1.msra.mxu0 %v1086
    %1088 = vmatprep.subr.mxu0 0.0
    %v1089 = vand.u32 %v396, 4294901760
    %v1090 = vsub.f32 %v396, %v1089
    %v1091 = vand.u32 %v1090, 4294901760
    %1092 = vmatpush1.msra.mxu0 %v1091
    %1093 = vmatprep.subr.mxu0 0.0
    %v1094 = vand.u32 %v397, 4294901760
    %v1095 = vsub.f32 %v397, %v1094
    %v1096 = vand.u32 %v1095, 4294901760
    %1097 = vmatpush1.msra.mxu0 %v1096
    %1098 = vmatprep.subr.mxu0 0.0
    %v1099 = vand.u32 %v398, 4294901760
    %v1100 = vsub.f32 %v398, %v1099
    %v1101 = vand.u32 %v1100, 4294901760
    %1102 = vmatpush1.msra.mxu0 %v1101
    %1103 = vmatprep.subr.mxu0 0.0
    %v1104 = vand.u32 %v399, 4294901760
    %v1105 = vsub.f32 %v399, %v1104
    %v1106 = vand.u32 %v1105, 4294901760
    %1107 = vmatpush1.msra.mxu0 %v1106
    %1108 = vmatprep.subr.mxu0 0.0
    %v1109 = vand.u32 %v400, 4294901760
    %v1110 = vsub.f32 %v400, %v1109
    %v1111 = vand.u32 %v1110, 4294901760
    %1112 = vmatpush1.msra.mxu0 %v1111
    %1113 = vmatprep.subr.mxu0 0.0
    %v1114 = vand.u32 %v401, 4294901760
    %v1115 = vsub.f32 %v401, %v1114
    %v1116 = vand.u32 %v1115, 4294901760
    %1117 = vmatpush1.msra.mxu0 %v1116
    %1118 = vmatprep.subr.mxu0 0.0
    %v1119 = vand.u32 %v402, 4294901760
    %v1120 = vsub.f32 %v402, %v1119
    %v1121 = vand.u32 %v1120, 4294901760
    %1122 = vmatpush1.msra.mxu0 %v1121
    %1123 = vmatprep.subr.mxu0 0.0
    %v1124 = vand.u32 %v403, 4294901760
    %v1125 = vsub.f32 %v403, %v1124
    %v1126 = vand.u32 %v1125, 4294901760
    %1127 = vmatpush1.msra.mxu0 %v1126
    %1128 = vmatprep.subr.mxu0 0.0
    %v1129 = vand.u32 %v404, 4294901760
    %v1130 = vsub.f32 %v404, %v1129
    %v1131 = vand.u32 %v1130, 4294901760
    %1132 = vmatpush1.msra.mxu0 %v1131
    %1133 = vmatprep.subr.mxu0 0.0
    %v1134 = vand.u32 %v405, 4294901760
    %v1135 = vsub.f32 %v405, %v1134
    %v1136 = vand.u32 %v1135, 4294901760
    %1137 = vmatpush1.msra.mxu0 %v1136
    %1138 = vmatprep.subr.mxu0 0.0
    %1139 = vmatpush1.msra.mxu0 0.0
    %1140 = vmatprep.subr.mxu0 0.0
    %1141 = vmatpush1.msra.mxu0 0.0
    %1142 = vmatprep.subr.mxu0 0.0
    %1143 = vmatpush1.msra.mxu0 0.0
    %1144 = vmatprep.subr.mxu0 0.0
    %1145 = vmatpush1.msra.mxu0 0.0
    %1146 = vmatprep.subr.mxu0 0.0
    %1147 = vmatpush1.msra.mxu0 0.0
    %1148 = vmatprep.subr.mxu0 0.0
    %1149 = vmatpush1.msra.mxu0 0.0
    %1150 = vmatprep.subr.mxu0 0.0
    %1151 = vmatpush1.msra.mxu0 0.0
    %1152 = vmatprep.subr.mxu0 0.0
    %1153 = vmatpush1.msra.mxu0 0.0
    %1154 = vmatprep.subr.mxu0 0.0
    %1155 = vmatpush1.msra.mxu0 0.0
    %1156 = vmatprep.subr.mxu0 0.0
    %1157 = vmatpush1.msra.mxu0 0.0
    %1158 = vmatprep.subr.mxu0 0.0
    %1159 = vmatpush1.msra.mxu0 0.0
    %1160 = vmatprep.subr.mxu0 0.0
    %1161 = vmatpush1.msra.mxu0 0.0
    %1162 = vmatprep.subr.mxu0 0.0
    %1163 = vmatpush1.msra.mxu0 0.0
    %1164 = vmatprep.subr.mxu0 0.0
    %1165 = vmatpush1.msra.mxu0 0.0
    %1166 = vmatprep.subr.mxu0 0.0
    %1167 = vmatpush1.msra.mxu0 0.0
    %1168 = vmatprep.subr.mxu0 0.0
    %1169 = vmatpush1.msra.mxu0 0.0
    %1170 = vmatprep.mubr.f32.mxu0 0.0
    %v1171 = vand.u32 %v382, 4294901760
    %1172 = vmatmul.mubr.f32.gmra.mrb[0].mxu0 %v1171
    %v1173 = vpop.f32.mrb[0].mxu0
    %v1174 = vadd.f32 %v999, %v1173
    %v1175 = vpop.f32.mrb[0].mxu0
    %1176 = vmatprep.mubr.f32.mxu0 0.0
    %v1177 = vand.u32 %v383, 4294901760
    %1178 = vmatmul.mubr.f32.gmra.mrb[0].mxu0 %v1177
    %v1179 = vpop.f32.mrb[0].mxu0
    %v1180 = vadd.f32 %v1007, %v1179
    %v1181 = vpop.f32.mrb[0].mxu0
    %1182 = vmatprep.mubr.f32.mxu0 0.0
    %v1183 = vand.u32 %v384, 4294901760
    %1184 = vmatmul.mubr.f32.gmra.mrb[0].mxu0 %v1183
    %v1185 = vpop.f32.mrb[0].mxu0
    %v1186 = vadd.f32 %v1015, %v1185
    %v1187 = vpop.f32.mrb[0].mxu0
    %1188 = vmatprep.mubr.f32.mxu0 0.0
    %v1189 = vand.u32 %v385, 4294901760
    %1190 = vmatmul.mubr.f32.gmra.mrb[0].mxu0 %v1189
    %v1191 = vpop.f32.mrb[0].mxu0
    %v1192 = vadd.f32 %v1023, %v1191
    %v1193 = vpop.f32.mrb[0].mxu0
    %1194 = vmatprep.mubr.f32.mxu0 0.0
    %v1195 = vand.u32 %v386, 4294901760
    %1196 = vmatmul.mubr.f32.gmra.mrb[0].mxu0 %v1195
    %v1197 = vpop.f32.mrb[0].mxu0
    %v1198 = vadd.f32 %v1031, %v1197
    %v1199 = vpop.f32.mrb[0].mxu0
    %1200 = vmatprep.mubr.f32.mxu0 0.0
    %v1201 = vand.u32 %v387, 4294901760
    %1202 = vmatmul.mubr.f32.gmra.mrb[0].mxu0 %v1201
    %v1203 = vpop.f32.mrb[0].mxu0
    %v1204 = vadd.f32 %v1039, %v1203
    %v1205 = vpop.f32.mrb[0].mxu0
    %1206 = vmatprep.mubr.f32.mxu0 0.0
    %v1207 = vand.u32 %v388, 4294901760
    %1208 = vmatmul.mubr.f32.gmra.mrb[0].mxu0 %v1207
    %v1209 = vpop.f32.mrb[0].mxu0
    %v1210 = vadd.f32 %v1047, %v1209
    %v1211 = vpop.f32.mrb[0].mxu0
    %1212 = vmatprep.mubr.f32.mxu0 0.0
    %v1213 = vand.u32 %v389, 4294901760
    %1214 = vmatmul.mubr.f32.gmra.mrb[0].mxu0 %v1213
    %v1215 = vpop.f32.mrb[0].mxu0
    %v1216 = vadd.f32 %v1055, %v1215
    %v1217 = vpop.f32.mrb[0].mxu0
    %1218 = vdwg.mxu0
    %1219 = vmatprep.subr.mxu0 0.0
    %v1220 = vand.u32 %v390, 4294901760
    %1221 = vmatpush1.msra.mxu0 %v1220
    %1222 = vmatprep.subr.mxu0 0.0
    %v1223 = vand.u32 %v391, 4294901760
    %1224 = vmatpush1.msra.mxu0 %v1223
    %1225 = vmatprep.subr.mxu0 0.0
    %v1226 = vand.u32 %v392, 4294901760
    %1227 = vmatpush1.msra.mxu0 %v1226
    %1228 = vmatprep.subr.mxu0 0.0
    %v1229 = vand.u32 %v393, 4294901760
    %1230 = vmatpush1.msra.mxu0 %v1229
    %1231 = vmatprep.subr.mxu0 0.0
    %v1232 = vand.u32 %v394, 4294901760
    %1233 = vmatpush1.msra.mxu0 %v1232
    %1234 = vmatprep.subr.mxu0 0.0
    %v1235 = vand.u32 %v395, 4294901760
    %1236 = vmatpush1.msra.mxu0 %v1235
    %1237 = vmatprep.subr.mxu0 0.0
    %v1238 = vand.u32 %v396, 4294901760
    %1239 = vmatpush1.msra.mxu0 %v1238
    %1240 = vmatprep.subr.mxu0 0.0
    %v1241 = vand.u32 %v397, 4294901760
    %1242 = vmatpush1.msra.mxu0 %v1241
    %1243 = vmatprep.subr.mxu0 0.0
    %v1244 = vand.u32 %v398, 4294901760
    %1245 = vmatpush1.msra.mxu0 %v1244
    %1246 = vmatprep.subr.mxu0 0.0
    %v1247 = vand.u32 %v399, 4294901760
    %1248 = vmatpush1.msra.mxu0 %v1247
    %1249 = vmatprep.subr.mxu0 0.0
    %v1250 = vand.u32 %v400, 4294901760
    %1251 = vmatpush1.msra.mxu0 %v1250
    %1252 = vmatprep.subr.mxu0 0.0
    %v1253 = vand.u32 %v401, 4294901760
    %1254 = vmatpush1.msra.mxu0 %v1253
    %1255 = vmatprep.subr.mxu0 0.0
    %v1256 = vand.u32 %v402, 4294901760
    %1257 = vmatpush1.msra.mxu0 %v1256
    %1258 = vmatprep.subr.mxu0 0.0
    %v1259 = vand.u32 %v403, 4294901760
    %1260 = vmatpush1.msra.mxu0 %v1259
    %1261 = vmatprep.subr.mxu0 0.0
    %v1262 = vand.u32 %v404, 4294901760
    %1263 = vmatpush1.msra.mxu0 %v1262
    %1264 = vmatprep.subr.mxu0 0.0
    %v1265 = vand.u32 %v405, 4294901760
    %1266 = vmatpush1.msra.mxu0 %v1265
    %1267 = vmatprep.subr.mxu0 0.0
    %1268 = vmatpush1.msra.mxu0 0.0
    %1269 = vmatprep.subr.mxu0 0.0
    %1270 = vmatpush1.msra.mxu0 0.0
    %1271 = vmatprep.subr.mxu0 0.0
    %1272 = vmatpush1.msra.mxu0 0.0
    %1273 = vmatprep.subr.mxu0 0.0
    %1274 = vmatpush1.msra.mxu0 0.0
    %1275 = vmatprep.subr.mxu0 0.0
    %1276 = vmatpush1.msra.mxu0 0.0
    %1277 = vmatprep.subr.mxu0 0.0
    %1278 = vmatpush1.msra.mxu0 0.0
    %1279 = vmatprep.subr.mxu0 0.0
    %1280 = vmatpush1.msra.mxu0 0.0
    %1281 = vmatprep.subr.mxu0 0.0
    %1282 = vmatpush1.msra.mxu0 0.0
    %1283 = vmatprep.subr.mxu0 0.0
    %1284 = vmatpush1.msra.mxu0 0.0
    %1285 = vmatprep.subr.mxu0 0.0
    %1286 = vmatpush1.msra.mxu0 0.0
    %1287 = vmatprep.subr.mxu0 0.0
    %1288 = vmatpush1.msra.mxu0 0.0
    %1289 = vmatprep.subr.mxu0 0.0
    %1290 = vmatpush1.msra.mxu0 0.0
    %1291 = vmatprep.subr.mxu0 0.0
    %1292 = vmatpush1.msra.mxu0 0.0
    %1293 = vmatprep.subr.mxu0 0.0
    %1294 = vmatpush1.msra.mxu0 0.0
    %1295 = vmatprep.subr.mxu0 0.0
    %1296 = vmatpush1.msra.mxu0 0.0
    %1297 = vmatprep.subr.mxu0 0.0
    %1298 = vmatpush1.msra.mxu0 0.0
    %1299 = vmatprep.mubr.f32.mxu0 0.0
    %v1300 = vand.u32 %v382, 4294901760
    %1301 = vmatmul.mubr.f32.gmra.mrb[0].mxu0 %v1300
    %v1302 = vpop.f32.mrb[0].mxu0
    %v1303 = vadd.f32 %v1174, %v1302
    %v1304 = vpop.f32.mrb[0].mxu0
    %1305 = vmatprep.mubr.f32.mxu0 0.0
    %v1306 = vand.u32 %v383, 4294901760
    %1307 = vmatmul.mubr.f32.gmra.mrb[0].mxu0 %v1306
    %v1308 = vpop.f32.mrb[0].mxu0
    %v1309 = vadd.f32 %v1180, %v1308
    %v1310 = vpop.f32.mrb[0].mxu0
    %1311 = vmatprep.mubr.f32.mxu0 0.0
    %v1312 = vand.u32 %v384, 4294901760
    %1313 = vmatmul.mubr.f32.gmra.mrb[0].mxu0 %v1312
    %v1314 = vpop.f32.mrb[0].mxu0
    %v1315 = vadd.f32 %v1186, %v1314
    %v1316 = vpop.f32.mrb[0].mxu0
    %1317 = vmatprep.mubr.f32.mxu0 0.0
    %v1318 = vand.u32 %v385, 4294901760
    %1319 = vmatmul.mubr.f32.gmra.mrb[0].mxu0 %v1318
    %v1320 = vpop.f32.mrb[0].mxu0
    %v1321 = vadd.f32 %v1192, %v1320
    %v1322 = vpop.f32.mrb[0].mxu0
    %1323 = vmatprep.mubr.f32.mxu0 0.0
    %v1324 = vand.u32 %v386, 4294901760
    %1325 = vmatmul.mubr.f32.gmra.mrb[0].mxu0 %v1324
    %v1326 = vpop.f32.mrb[0].mxu0
    %v1327 = vadd.f32 %v1198, %v1326
    %v1328 = vpop.f32.mrb[0].mxu0
    %1329 = vmatprep.mubr.f32.mxu0 0.0
    %v1330 = vand.u32 %v387, 4294901760
    %1331 = vmatmul.mubr.f32.gmra.mrb[0].mxu0 %v1330
    %v1332 = vpop.f32.mrb[0].mxu0
    %v1333 = vadd.f32 %v1204, %v1332
    %v1334 = vpop.f32.mrb[0].mxu0
    %1335 = vmatprep.mubr.f32.mxu0 0.0
    %v1336 = vand.u32 %v388, 4294901760
    %1337 = vmatmul.mubr.f32.gmra.mrb[0].mxu0 %v1336
    %v1338 = vpop.f32.mrb[0].mxu0
    %v1339 = vadd.f32 %v1210, %v1338
    %v1340 = vpop.f32.mrb[0].mxu0
    %1341 = vmatprep.mubr.f32.mxu0 0.0
    %v1342 = vand.u32 %v389, 4294901760
    %1343 = vmatmul.mubr.f32.gmra.mrb[0].mxu0 %v1342
    %v1344 = vpop.f32.mrb[0].mxu0
    %v1345 = vadd.f32 %v1216, %v1344
    %v1346 = vpop.f32.mrb[0].mxu0
    %1347 = vdwg.mxu0
    %v1348 = vrot.slane %v1303, 4
    %v1349 = vmax.f32 %v1303, %v1348
    %v1350 = vrot.slane %v1349, 2
    %v1351 = vmax.f32 %v1349, %v1350
    %v1352 = vrot.slane %v1351, 1
    %v1353 = vmax.f32 %v1351, %v1352
    %v1354 = vrot.slane %v1309, 4
    %v1355 = vmax.f32 %v1309, %v1354
    %v1356 = vrot.slane %v1355, 2
    %v1357 = vmax.f32 %v1355, %v1356
    %v1358 = vrot.slane %v1357, 1
    %v1359 = vmax.f32 %v1357, %v1358
    %v1360 = vrot.slane %v1315, 4
    %v1361 = vmax.f32 %v1315, %v1360
    %v1362 = vrot.slane %v1361, 2
    %v1363 = vmax.f32 %v1361, %v1362
    %v1364 = vrot.slane %v1363, 1
    %v1365 = vmax.f32 %v1363, %v1364
    %v1366 = vrot.slane %v1321, 4
    %v1367 = vmax.f32 %v1321, %v1366
    %v1368 = vrot.slane %v1367, 2
    %v1369 = vmax.f32 %v1367, %v1368
    %v1370 = vrot.slane %v1369, 1
    %v1371 = vmax.f32 %v1369, %v1370
    %v1372 = vrot.slane %v1327, 4
    %v1373 = vmax.f32 %v1327, %v1372
    %v1374 = vrot.slane %v1373, 2
    %v1375 = vmax.f32 %v1373, %v1374
    %v1376 = vrot.slane %v1375, 1
    %v1377 = vmax.f32 %v1375, %v1376
    %v1378 = vrot.slane %v1333, 4
    %v1379 = vmax.f32 %v1333, %v1378
    %v1380 = vrot.slane %v1379, 2
    %v1381 = vmax.f32 %v1379, %v1380
    %v1382 = vrot.slane %v1381, 1
    %v1383 = vmax.f32 %v1381, %v1382
    %v1384 = vrot.slane %v1339, 4
    %v1385 = vmax.f32 %v1339, %v1384
    %v1386 = vrot.slane %v1385, 2
    %v1387 = vmax.f32 %v1385, %v1386
    %v1388 = vrot.slane %v1387, 1
    %v1389 = vmax.f32 %v1387, %v1388
    %v1390 = vrot.slane %v1345, 4
    %v1391 = vmax.f32 %v1345, %v1390
    %v1392 = vrot.slane %v1391, 2
    %v1393 = vmax.f32 %v1391, %v1392
    %v1394 = vrot.slane %v1393, 1
    %v1395 = vmax.f32 %v1393, %v1394
    %v1396 = vsub.f32 %v1303, %v1353
    %v1397 = vsub.f32 %v1309, %v1359
    %v1398 = vsub.f32 %v1315, %v1365
    %v1399 = vsub.f32 %v1321, %v1371
    %v1400 = vsub.f32 %v1327, %v1377
    %v1401 = vsub.f32 %v1333, %v1383
    %v1402 = vsub.f32 %v1339, %v1389
    %v1403 = vsub.f32 %v1345, %v1395
    %v1404 = vmul.f32 %v1396, 1.442695
    %v1405 = vpow.pop %v1404
    %v1406 = vmul.f32 %v1397, 1.442695
    %v1407 = vpow.pop %v1406
    %v1408 = vmul.f32 %v1398, 1.442695
    %v1409 = vpow.pop %v1408
    %v1410 = vmul.f32 %v1399, 1.442695
    %v1411 = vpow.pop %v1410
    %v1412 = vmul.f32 %v1400, 1.442695
    %v1413 = vpow.pop %v1412
    %v1414 = vmul.f32 %v1401, 1.442695
    %v1415 = vpow.pop %v1414
    %v1416 = vmul.f32 %v1402, 1.442695
    %v1417 = vpow.pop %v1416
    %v1418 = vmul.f32 %v1403, 1.442695
    %v1419 = vpow.pop %v1418
    %v1420 = vrot.slane %v1405, 4
    %v1421 = vadd.f32 %v1405, %v1420
    %v1422 = vrot.slane %v1421, 2
    %v1423 = vadd.f32 %v1421, %v1422
    %v1424 = vrot.slane %v1423, 1
    %v1425 = vadd.f32 %v1423, %v1424
    %v1426 = vrot.slane %v1407, 4
    %v1427 = vadd.f32 %v1407, %v1426
    %v1428 = vrot.slane %v1427, 2
    %v1429 = vadd.f32 %v1427, %v1428
    %v1430 = vrot.slane %v1429, 1
    %v1431 = vadd.f32 %v1429, %v1430
    %v1432 = vrot.slane %v1409, 4
    %v1433 = vadd.f32 %v1409, %v1432
    %v1434 = vrot.slane %v1433, 2
    %v1435 = vadd.f32 %v1433, %v1434
    %v1436 = vrot.slane %v1435, 1
    %v1437 = vadd.f32 %v1435, %v1436
    %v1438 = vrot.slane %v1411, 4
    %v1439 = vadd.f32 %v1411, %v1438
    %v1440 = vrot.slane %v1439, 2
    %v1441 = vadd.f32 %v1439, %v1440
    %v1442 = vrot.slane %v1441, 1
    %v1443 = vadd.f32 %v1441, %v1442
    %v1444 = vrot.slane %v1413, 4
    %v1445 = vadd.f32 %v1413, %v1444
    %v1446 = vrot.slane %v1445, 2
    %v1447 = vadd.f32 %v1445, %v1446
    %v1448 = vrot.slane %v1447, 1
    %v1449 = vadd.f32 %v1447, %v1448
    %v1450 = vrot.slane %v1415, 4
    %v1451 = vadd.f32 %v1415, %v1450
    %v1452 = vrot.slane %v1451, 2
    %v1453 = vadd.f32 %v1451, %v1452
    %v1454 = vrot.slane %v1453, 1
    %v1455 = vadd.f32 %v1453, %v1454
    %v1456 = vrot.slane %v1417, 4
    %v1457 = vadd.f32 %v1417, %v1456
    %v1458 = vrot.slane %v1457, 2
    %v1459 = vadd.f32 %v1457, %v1458
    %v1460 = vrot.slane %v1459, 1
    %v1461 = vadd.f32 %v1459, %v1460
    %v1462 = vrot.slane %v1419, 4
    %v1463 = vadd.f32 %v1419, %v1462
    %v1464 = vrot.slane %v1463, 2
    %v1465 = vadd.f32 %v1463, %v1464
    %v1466 = vrot.slane %v1465, 1
    %v1467 = vadd.f32 %v1465, %v1466
    %v1468 = vrcp.pop %v1425
    %v1469 = vrcp.pop %v1431
    %v1470 = vrcp.pop %v1437
    %v1471 = vrcp.pop %v1443
    %v1472 = vrcp.pop %v1449
    %v1473 = vrcp.pop %v1455
    %v1474 = vrcp.pop %v1461
    %v1475 = vrcp.pop %v1467
    %v1476 = vmul.f32 %v1405, %v1468
    %v1477 = vmul.f32 %v1407, %v1469
    %v1478 = vmul.f32 %v1409, %v1470
    %v1479 = vmul.f32 %v1411, %v1471
    %v1480 = vmul.f32 %v1413, %v1472
    %v1481 = vmul.f32 %v1415, %v1473
    %v1482 = vmul.f32 %v1417, %v1474
    %v1483 = vmul.f32 %v1419, %v1475
    %v1484 = vmul.f32 %v1476, %v248
    %v1485 = vmul.f32 %v1477, %v254
    %v1486 = vmul.f32 %v1478, %v260
    %v1487 = vmul.f32 %v1479, %v266
    %v1488 = vmul.f32 %v1480, %v272
    %v1489 = vmul.f32 %v1481, %v278
    %v1490 = vmul.f32 %v1482, %v284
    %v1491 = vmul.f32 %v1483, %v290
    %v1492 = vrot.slane %v1484, 4
    %v1493 = vadd.f32 %v1484, %v1492
    %v1494 = vrot.slane %v1493, 2
    %v1495 = vadd.f32 %v1493, %v1494
    %v1496 = vrot.slane %v1495, 1
    %v1497 = vadd.f32 %v1495, %v1496
    %v1498 = vrot.slane %v1485, 4
    %v1499 = vadd.f32 %v1485, %v1498
    %v1500 = vrot.slane %v1499, 2
    %v1501 = vadd.f32 %v1499, %v1500
    %v1502 = vrot.slane %v1501, 1
    %v1503 = vadd.f32 %v1501, %v1502
    %v1504 = vrot.slane %v1486, 4
    %v1505 = vadd.f32 %v1486, %v1504
    %v1506 = vrot.slane %v1505, 2
    %v1507 = vadd.f32 %v1505, %v1506
    %v1508 = vrot.slane %v1507, 1
    %v1509 = vadd.f32 %v1507, %v1508
    %v1510 = vrot.slane %v1487, 4
    %v1511 = vadd.f32 %v1487, %v1510
    %v1512 = vrot.slane %v1511, 2
    %v1513 = vadd.f32 %v1511, %v1512
    %v1514 = vrot.slane %v1513, 1
    %v1515 = vadd.f32 %v1513, %v1514
    %v1516 = vrot.slane %v1488, 4
    %v1517 = vadd.f32 %v1488, %v1516
    %v1518 = vrot.slane %v1517, 2
    %v1519 = vadd.f32 %v1517, %v1518
    %v1520 = vrot.slane %v1519, 1
    %v1521 = vadd.f32 %v1519, %v1520
    %v1522 = vrot.slane %v1489, 4
    %v1523 = vadd.f32 %v1489, %v1522
    %v1524 = vrot.slane %v1523, 2
    %v1525 = vadd.f32 %v1523, %v1524
    %v1526 = vrot.slane %v1525, 1
    %v1527 = vadd.f32 %v1525, %v1526
    %v1528 = vrot.slane %v1490, 4
    %v1529 = vadd.f32 %v1490, %v1528
    %v1530 = vrot.slane %v1529, 2
    %v1531 = vadd.f32 %v1529, %v1530
    %v1532 = vrot.slane %v1531, 1
    %v1533 = vadd.f32 %v1531, %v1532
    %v1534 = vrot.slane %v1491, 4
    %v1535 = vadd.f32 %v1491, %v1534
    %v1536 = vrot.slane %v1535, 2
    %v1537 = vadd.f32 %v1535, %v1536
    %v1538 = vrot.slane %v1537, 1
    %v1539 = vadd.f32 %v1537, %v1538
    %vm1548 = vcmask 1041409
    %v1549 = vsel %vm1548, %v1503, %v1497
    %vm1550 = vcmask 1042434
    %v1551 = vsel %vm1550, %v1509, %v1549
    %vm1552 = vcmask 1043459
    %v1553 = vsel %vm1552, %v1515, %v1551
    %vm1554 = vcmask 1044484
    %v1555 = vsel %vm1554, %v1521, %v1553
    %vm1556 = vcmask 1045509
    %v1557 = vsel %vm1556, %v1527, %v1555
    %vm1558 = vcmask 1046534
    %v1559 = vsel %vm1558, %v1533, %v1557
    %vm1560 = vcmask 1047559
    %v1561 = vsel %vm1560, %v1539, %v1559
    %1563 = vadd.xlane.f32.xlu0 %v1561
    %v1564 = vpop.xlane.xlu0 %1563
    %v1565 = vrcp.pop 128.0
    %v1566 = vmul.f32 %v1564, %v1565
    %v1568 = vrot.slane %v1566, 1
    %v1569 = vrot.slane %v1566, 2
    %v1570 = vrot.slane %v1566, 3
    %v1571 = vrot.slane %v1566, 4
    %v1572 = vrot.slane %v1566, 5
    %v1573 = vrot.slane %v1566, 6
    %v1574 = vrot.slane %v1566, 7
    %v1583 = vsub.f32 %v1497, %v1566
    %v1584 = vsub.f32 %v1503, %v1568
    %v1585 = vsub.f32 %v1509, %v1569
    %v1586 = vsub.f32 %v1515, %v1570
    %v1587 = vsub.f32 %v1521, %v1571
    %v1588 = vsub.f32 %v1527, %v1572
    %v1589 = vsub.f32 %v1533, %v1573
    %v1590 = vsub.f32 %v1539, %v1574
    %v1591 = vmul.f32 %v1583, %v1583
    %v1592 = vmul.f32 %v1584, %v1584
    %v1593 = vmul.f32 %v1585, %v1585
    %v1594 = vmul.f32 %v1586, %v1586
    %v1595 = vmul.f32 %v1587, %v1587
    %v1596 = vmul.f32 %v1588, %v1588
    %v1597 = vmul.f32 %v1589, %v1589
    %v1598 = vmul.f32 %v1590, %v1590
    %v1607 = vrot.slane %v1592, 7
    %v1608 = vsel %vm1548, %v1607, %v1591
    %v1609 = vrot.slane %v1593, 6
    %v1610 = vsel %vm1550, %v1609, %v1608
    %v1611 = vrot.slane %v1594, 5
    %v1612 = vsel %vm1552, %v1611, %v1610
    %v1613 = vrot.slane %v1595, 4
    %v1614 = vsel %vm1554, %v1613, %v1612
    %v1615 = vrot.slane %v1596, 3
    %v1616 = vsel %vm1556, %v1615, %v1614
    %v1617 = vrot.slane %v1597, 2
    %v1618 = vsel %vm1558, %v1617, %v1616
    %v1619 = vrot.slane %v1598, 1
    %v1620 = vsel %vm1560, %v1619, %v1618
    %1622 = vadd.xlane.f32.xlu0 %v1620
    %v1623 = vpop.xlane.xlu0 %1622
    %v1624 = vmul.f32 %v1623, %v1565
    %v1625 = vadd.f32 %v1624, 1e-05
    %v1626 = vrsqrt.pop %v1625
    %v1628 = vrot.slane %v1626, 1
    %v1629 = vrot.slane %v1626, 2
    %v1630 = vrot.slane %v1626, 3
    %v1631 = vrot.slane %v1626, 4
    %v1632 = vrot.slane %v1626, 5
    %v1633 = vrot.slane %v1626, 6
    %v1634 = vrot.slane %v1626, 7
    %v1643 = vmul.f32 %v1583, %v1626
    %v1644 = vmul.f32 %v1584, %v1628
    %v1645 = vmul.f32 %v1585, %v1629
    %v1646 = vmul.f32 %v1586, %v1630
    %v1647 = vmul.f32 %v1587, %v1631
    %v1648 = vmul.f32 %v1588, %v1632
    %v1649 = vmul.f32 %v1589, %v1633
    %v1650 = vmul.f32 %v1590, %v1634
    %v1651 = vlaneseq
    %v1652 = vshrl.u32 %v1651, 7
    %v1653 = vsub.s32 1, %v1652
    %v1654 = vrot.slane %v64, %v1653
    %v1655 = vmul.f32 %v1643, %v1654
    %v1656 = vmul.f32 %v1644, %v1654
    %v1657 = vmul.f32 %v1645, %v1654
    %v1658 = vmul.f32 %v1646, %v1654
    %v1659 = vmul.f32 %v1647, %v1654
    %v1660 = vmul.f32 %v1648, %v1654
    %v1661 = vmul.f32 %v1649, %v1654
    %v1662 = vmul.f32 %v1650, %v1654
    %v1663 = vlaneseq
    %v1664 = vshrl.u32 %v1663, 7
    %v1665 = vsub.s32 2, %v1664
    %v1666 = vrot.slane %v64, %v1665
    %v1667 = vadd.f32 %v1655, %v1666
    %v1668 = vadd.f32 %v1656, %v1666
    %v1669 = vadd.f32 %v1657, %v1666
    %v1670 = vadd.f32 %v1658, %v1666
    %v1671 = vadd.f32 %v1659, %v1666
    %v1672 = vadd.f32 %v1660, %v1666
    %v1673 = vadd.f32 %v1661, %v1666
    %v1674 = vadd.f32 %v1662, %v1666
    %v1675 = vmax.f32 %v1667, 0.0
    %v1676 = vmax.f32 %v1668, 0.0
    %v1677 = vmax.f32 %v1669, 0.0
    %v1678 = vmax.f32 %v1670, 0.0
    %v1679 = vmax.f32 %v1671, 0.0
    %v1680 = vmax.f32 %v1672, 0.0
    %v1681 = vmax.f32 %v1673, 0.0
    %v1682 = vmax.f32 %v1674, 0.0
    %v1683 = vld [vmem:[#allocation2] sm:$0xff]
    %v1684 = vld [vmem:[#allocation2 + $0x8] sm:$0xff]
    %v1685 = vld [vmem:[#allocation2 + $0x10] sm:$0xff]
    %v1686 = vld [vmem:[#allocation2 + $0x18] sm:$0xff]
    %v1687 = vld [vmem:[#allocation2 + $0x20] sm:$0xff]
    %v1688 = vld [vmem:[#allocation2 + $0x28] sm:$0xff]
    %v1689 = vld [vmem:[#allocation2 + $0x30] sm:$0xff]
    %v1690 = vld [vmem:[#allocation2 + $0x38] sm:$0xff]
    %v1691 = vld [vmem:[#allocation2 + $0x40] sm:$0xff]
    %v1692 = vld [vmem:[#allocation2 + $0x48] sm:$0xff]
    %v1693 = vld [vmem:[#allocation2 + $0x50] sm:$0xff]
    %v1694 = vld [vmem:[#allocation2 + $0x58] sm:$0xff]
    %v1695 = vld [vmem:[#allocation2 + $0x60] sm:$0xff]
    %v1696 = vld [vmem:[#allocation2 + $0x68] sm:$0xff]
    %v1697 = vld [vmem:[#allocation2 + $0x70] sm:$0xff]
    %v1698 = vld [vmem:[#allocation2 + $0x78] sm:$0xff]
    %v1707 = vrot.slane %v1676, 7
    %v1708 = vsel %vm1548, %v1707, %v1675
    %v1709 = vrot.slane %v1677, 6
    %v1710 = vsel %vm1550, %v1709, %v1708
    %v1711 = vrot.slane %v1678, 5
    %v1712 = vsel %vm1552, %v1711, %v1710
    %v1713 = vrot.slane %v1679, 4
    %v1714 = vsel %vm1554, %v1713, %v1712
    %v1715 = vrot.slane %v1680, 3
    %v1716 = vsel %vm1556, %v1715, %v1714
    %v1717 = vrot.slane %v1681, 2
    %v1718 = vsel %vm1558, %v1717, %v1716
    %v1719 = vrot.slane %v1682, 1
    %v1720 = vsel %vm1560, %v1719, %v1718
    %1722 = vmatprep.subr.mxu0 0.0
    %1723 = vmatpush1.msra.mxu0 %v1683
    %1724 = vmatprep.subr.mxu0 0.0
    %1725 = vmatpush1.msra.mxu0 %v1684
    %1726 = vmatprep.subr.mxu0 0.0
    %1727 = vmatpush1.msra.mxu0 %v1685
    %1728 = vmatprep.subr.mxu0 0.0
    %1729 = vmatpush1.msra.mxu0 %v1686
    %1730 = vmatprep.subr.mxu0 0.0
    %1731 = vmatpush1.msra.mxu0 %v1687
    %1732 = vmatprep.subr.mxu0 0.0
    %1733 = vmatpush1.msra.mxu0 %v1688
    %1734 = vmatprep.subr.mxu0 0.0
    %1735 = vmatpush1.msra.mxu0 %v1689
    %1736 = vmatprep.subr.mxu0 0.0
    %1737 = vmatpush1.msra.mxu0 %v1690
    %1738 = vmatprep.subr.mxu0 0.0
    %1739 = vmatpush1.msra.mxu0 %v1691
    %1740 = vmatprep.subr.mxu0 0.0
    %1741 = vmatpush1.msra.mxu0 %v1692
    %1742 = vmatprep.subr.mxu0 0.0
    %1743 = vmatpush1.msra.mxu0 %v1693
    %1744 = vmatprep.subr.mxu0 0.0
    %1745 = vmatpush1.msra.mxu0 %v1694
    %1746 = vmatprep.subr.mxu0 0.0
    %1747 = vmatpush1.msra.mxu0 %v1695
    %1748 = vmatprep.subr.mxu0 0.0
    %1749 = vmatpush1.msra.mxu0 %v1696
    %1750 = vmatprep.subr.mxu0 0.0
    %1751 = vmatpush1.msra.mxu0 %v1697
    %1752 = vmatprep.subr.mxu0 0.0
    %1753 = vmatpush1.msra.mxu0 %v1698
    %1754 = vmatprep.subr.mxu0 0.0
    %1755 = vmatpush1.msra.mxu0 0.0
    %1756 = vmatprep.subr.mxu0 0.0
    %1757 = vmatpush1.msra.mxu0 0.0
    %1758 = vmatprep.subr.mxu0 0.0
    %1759 = vmatpush1.msra.mxu0 0.0
    %1760 = vmatprep.subr.mxu0 0.0
    %1761 = vmatpush1.msra.mxu0 0.0
    %1762 = vmatprep.subr.mxu0 0.0
    %1763 = vmatpush1.msra.mxu0 0.0
    %1764 = vmatprep.subr.mxu0 0.0
    %1765 = vmatpush1.msra.mxu0 0.0
    %1766 = vmatprep.subr.mxu0 0.0
    %1767 = vmatpush1.msra.mxu0 0.0
    %1768 = vmatprep.subr.mxu0 0.0
    %1769 = vmatpush1.msra.mxu0 0.0
    %1770 = vmatprep.subr.mxu0 0.0
    %1771 = vmatpush1.msra.mxu0 0.0
    %1772 = vmatprep.subr.mxu0 0.0
    %1773 = vmatpush1.msra.mxu0 0.0
    %1774 = vmatprep.subr.mxu0 0.0
    %1775 = vmatpush1.msra.mxu0 0.0
    %1776 = vmatprep.subr.mxu0 0.0
    %1777 = vmatpush1.msra.mxu0 0.0
    %1778 = vmatprep.subr.mxu0 0.0
    %1779 = vmatpush1.msra.mxu0 0.0
    %1780 = vmatprep.subr.mxu0 0.0
    %1781 = vmatpush1.msra.mxu0 0.0
    %1782 = vmatprep.subr.mxu0 0.0
    %1783 = vmatpush1.msra.mxu0 0.0
    %1784 = vmatprep.subr.mxu0 0.0
    %1785 = vmatpush1.msra.mxu0 0.0
    %1786 = vmatprep.mubr.f32.mxu0 0.0
    %1787 = vmatmul.mubr.f32.gmra.mrb[0].mxu0 %v1720
    %v1788 = vpop.f32.mrb[0].mxu0
    %v1789 = vadd.f32 0.0, %v1788
    %v1790 = vpop.f32.mrb[0].mxu0
    %1791 = vdwg.mxu0
    %1792 = vst [vmem:[#allocation7] sm:$0xff] %v1789
    // Predicated region
    $region38: #{tpu_custom_call.1} parent=1 // pred_check
      _
    $region39: #{tpu_custom_call.1} parent=1 // pred_check_branch
      %1794 = sbr.rel (0) target = $region41
    $region40: #{tpu_custom_call.1} parent=1 // pred_region
      %s1796 = ssub.s32 128, 128
      %1797 = vsyncadd [#allocation4], %s1796
      %s1799 = sshll.u32 [#allocation7], 4
      %s1800 = int_to_ptr.vmem [resolvable:$true] %s1799
      %1802 = dma.vmem_to_hbm [thread:$0]  %s1800, 128, %s7, [#allocation4]
    $region41: #{tpu_custom_call.1} parent=1 // pred_fallthru
      _
    // Predicated region
    $region42: #{tpu_custom_call.1} parent=1 // pred_check
      _
    $region43: #{tpu_custom_call.1} parent=1 // pred_check_branch
      %1804 = sbr.rel (0) target = $region45
    $region44: #{tpu_custom_call.1} parent=1 // pred_region
      %1805 = dma.done [#allocation4], 128
    $region45: #{tpu_custom_call.1} parent=1 // pred_fallthru
      _
    %1806 = vsyncpa [#allocation3], 1
    %1807 = vsyncpa [#allocation6], 1
    %1808 = vsyncpa [#allocation4], 1

</llo_original>
